<compile_context>
chip_gen: v6e
topology: v6e:2x2x1
jax: 0.10.0
libtpu: 0.0.40
codegen_flags: <defaults>
</compile_context>

<pallas_src>
import functools
import math

import numpy as np

import jax
import jax.numpy as jnp
from jax import lax
from jax.experimental import pallas as pl
from jax.experimental.pallas import tpu as pltpu


def _round_up(x: int, m: int) -> int:
    return (x + m - 1) // m * m


def _vmem_capacity_bytes() -> int:
    """Generation-aware VMEM capacity (falls back to a conservative 64 MiB)."""
    try:
        info = pltpu.get_tpu_info()
        cap = getattr(info, "vmem_capacity_bytes", None)
        if cap:
            return int(cap)
    except Exception:
        pass
    return 64 * 1024 * 1024


# ----------------------------------------------------------------------------
# Ortho_Trans kernel
# ----------------------------------------------------------------------------
def _ortho_trans_kernel(z_ref, o_ref, *, T: int, eps: float):
    # z_ref / o_ref: (Gb, c, d) block; last dim is the full flattened weight dim.
    Z = z_ref[...].astype(jnp.float32)                     # (Gb, c, d)
    gb, c, d = Z.shape

    mean = jnp.sum(Z, axis=-1, keepdims=True) * (1.0 / d)
    Zc = Z - mean

    # Batched Gram matrix S = Zc Zc^T without materializing a transpose:
    # contract the last axis of both operands, batch over the group axis.
    S = lax.dot_general(
        Zc, Zc,
        dimension_numbers=(((2,), (2,)), ((0,), (0,))),
        preferred_element_type=jnp.float32)                # (Gb, c, c)

    r_i = lax.broadcasted_iota(jnp.int32, (c, c), 0)
    c_i = lax.broadcasted_iota(jnp.int32, (c, c), 1)
    eye = (r_i == c_i).astype(jnp.float32)                 # (c, c)
    S = S + eps * eye[None, :, :]

    # Frobenius normalization via rsqrt (EUP), per group.
    sumsq = jnp.sum(S * S, axis=(1, 2), keepdims=True)     # (Gb, 1, 1)
    inv_norm = lax.rsqrt(sumsq)                            # 1 / ||S||_F
    S = S * inv_norm

    # Newton-Schulz: B_{t+1} = 1.5 B_t - 0.5 B_t^3 S, starting from B_0 = I.
    # Iteration 0 is peeled: B_1 = 1.5 I - 0.5 S (no matmuls).  The remaining
    # iterations use two *independent* products (B@B and B@S) so the MXU can
    # keep two tiny (c,c) matmuls in flight instead of a serial chain.
    dn_cc = (((2,), (1,)), ((0,), (0,)))
    if T >= 1:
        B = 1.5 * eye[None, :, :] - 0.5 * S
        for _ in range(T - 1):                             # static unroll
            B2 = lax.dot_general(B, B, dn_cc, preferred_element_type=jnp.float32)
            BS = lax.dot_general(B, S, dn_cc, preferred_element_type=jnp.float32)
            B = 1.5 * B - 0.5 * lax.dot_general(
                B2, BS, dn_cc, preferred_element_type=jnp.float32)
    else:
        B = jnp.broadcast_to(eye[None, :, :], S.shape)

    # Fold the final 1/sqrt(norm_S) into the small (c,c) matrix.
    B = B * jnp.sqrt(inv_norm)

    # TODO(synk): optionally cast Zc to bf16 for the two large-K matmuls on
    # v6e/v7x (keeping f32 accumulation) once accuracy budget allows.
    W = lax.dot_general(B, Zc, dn_cc, preferred_element_type=jnp.float32)
    o_ref[...] = W.astype(o_ref.dtype)                     # (Gb, c, d)


def ortho_trans(weight: jax.Array, T: int = 5, norm_groups: int = 1,
                eps: float = 1e-5) -> jax.Array:
    """Pallas implementation of Ortho_Trans.forward (any weight rank >= 2)."""
    out_c = weight.shape[0]
    assert out_c % norm_groups == 0
    g = norm_groups
    c = out_c // g
    d = int(np.prod(weight.shape[1:]))

    Z = weight.reshape(g, c, d)

    vmem_cap = _vmem_capacity_bytes()
    budget = vmem_cap // 4
    vmem_limit = vmem_cap // 2

    # Batch several groups per grid step, but keep >= 2 grid steps (when g > 1)
    # so the input DMA double-buffers and both v7x TensorCores get work.
    per_group_bytes = (6 * c * d + 8 * c * c) * 4
    gb = 1
    for cand in range(1, g + 1):
        if g % cand != 0:
            continue
        if cand * per_group_bytes > budget:
            continue
        if g > 1 and g // cand < 2:
            continue
        gb = cand

    kernel = functools.partial(_ortho_trans_kernel, T=T, eps=eps)
    W = pl.pallas_call(
        kernel,
        out_shape=jax.ShapeDtypeStruct((g, c, d), weight.dtype),
        grid=(g // gb,),
        in_specs=[pl.BlockSpec((gb, c, d), lambda i: (i, 0, 0))],
        out_specs=pl.BlockSpec((gb, c, d), lambda i: (i, 0, 0)),
        compiler_params=pltpu.CompilerParams(
            dimension_semantics=("parallel",),
            vmem_limit_bytes=vmem_limit),
    )(Z)
    return W.reshape(weight.shape)


# ----------------------------------------------------------------------------
# Row-tiled GCN kernels
# ----------------------------------------------------------------------------
def _support_kernel(x_ref, t_ref, o_ref):
    # support row tile = x_tile @ t ; native-dtype operands, f32 accumulation.
    o_ref[...] = jnp.dot(x_ref[...], t_ref[...],
                         preferred_element_type=jnp.float32).astype(o_ref.dtype)


def _gcn_agg_kernel(adj_ref, x_ref, sup_ref, sw_ref, out_ref, stats_ref):
    # Pre-BN output tile: both matmuls in one grid step, summed in f32.
    out = jnp.dot(adj_ref[...], sup_ref[...], preferred_element_type=jnp.float32)
    out = out + jnp.dot(x_ref[...], sw_ref[...], preferred_element_type=jnp.float32)
    out_ref[...] = out.astype(out_ref.dtype)

    # Per-tile BatchNorm partial statistics (zero-padded rows contribute 0).
    s = jnp.sum(out, axis=0, keepdims=True)            # (1, f_out_p)
    sq = jnp.sum(out * out, axis=0, keepdims=True)     # (1, f_out_p)
    stats_ref[...] = jnp.concatenate([s, sq], axis=0)[None, :, :]


def _bn_norm_kernel(y_ref, mean_ref, inv_ref, o_ref):
    # Trivial normalize pass: (y - mean) * rsqrt(var + eps), precomputed stats.
    o_ref[...] = ((y_ref[...] - mean_ref[...]) * inv_ref[...]).astype(o_ref.dtype)


def gcn_ortho_forward(x, adj, weight, self_weight, *, weight_beta: float,
                      T2: int = 5, group2: int = 1, with_bn: bool = True,
                      bn_eps: float = 1e-5):
    """GraphConvolutionBS_ortho.forward with module defaults
    (Ortho=True, withloop=True, withbn=True, bias=False, res=False, sigma=id)."""
    f_in, f_out = weight.shape
    assert f_in == f_out, "Ortho blend with identity requires a square weight"
    n = x.shape[0]
    assert adj.shape == (n, n)

    # Ortho-blended, orthogonalized weight.
    eye = jnp.eye(f_in, dtype=weight.dtype)
    we = weight_beta * weight + (1.0 - weight_beta) * eye
    t = ortho_trans(we, T=T2, norm_groups=group2)

    vmem_cap = _vmem_capacity_bytes()
    budget = vmem_cap // 4
    vmem_limit = vmem_cap // 2

    # Lane-dense output width; row tile sized to the chip's VMEM.
    f_out_p = _round_up(f_out, 128)
    n_p0 = _round_up(n, 8)
    itemsize = jnp.dtype(adj.dtype).itemsize
    tm = min(512, n_p0)
    while tm > 8 and (2 * tm * n_p0 * itemsize + n_p0 * f_out_p * 4) > budget:
        tm = max(8, _round_up(tm // 2, 8))
    n_p = _round_up(n, tm)
    n_tiles = n_p // tm

    # Zero padding: extra rows/cols are exactly zero, so matmuls and the BN
    # partial sums are unaffected; padding is sliced off at the end.
    x_p = x if n_p == n else jnp.pad(x, ((0, n_p - n), (0, 0)))
    adj_p = adj if n_p == n else jnp.pad(adj, ((0, n_p - n), (0, n_p - n)))
    pad_f = f_out_p - f_out
    t_p = t if pad_f == 0 else jnp.pad(t, ((0, 0), (0, pad_f)))
    sw_p = self_weight if pad_f == 0 else jnp.pad(self_weight, ((0, 0), (0, pad_f)))

    # Pass A: support = x @ t (row-tiled, t resident).
    support = pl.pallas_call(
        _support_kernel,
        out_shape=jax.ShapeDtypeStruct((n_p, f_out_p), x.dtype),
        grid=(n_tiles,),
        in_specs=[pl.BlockSpec((tm, f_in), lambda i: (i, 0)),
                  pl.BlockSpec((f_in, f_out_p), lambda i: (0, 0))],
        out_specs=pl.BlockSpec((tm, f_out_p), lambda i: (i, 0)),
        compiler_params=pltpu.CompilerParams(
            dimension_semantics=("parallel",),
            vmem_limit_bytes=vmem_limit),
    )(x_p, t_p)

    # Pass B: out_pre = adj @ support + x @ self_weight, plus per-tile column
    # sum / sum-of-squares for the decoupled BatchNorm.
    out_pre, stats = pl.pallas_call(
        _gcn_agg_kernel,
        out_shape=(jax.ShapeDtypeStruct((n_p, f_out_p), jnp.float32),
                   jax.ShapeDtypeStruct((n_tiles, 2, f_out_p), jnp.float32)),
        grid=(n_tiles,),
        in_specs=[pl.BlockSpec((tm, n_p), lambda i: (i, 0)),        # adj rows
                  pl.BlockSpec((tm, f_in), lambda i: (i, 0)),       # x rows
                  pl.BlockSpec((n_p, f_out_p), lambda i: (0, 0)),   # support
                  pl.BlockSpec((f_in, f_out_p), lambda i: (0, 0))], # self_weight
        out_specs=(pl.BlockSpec((tm, f_out_p), lambda i: (i, 0)),
                   pl.BlockSpec((1, 2, f_out_p), lambda i: (i, 0, 0))),
        compiler_params=pltpu.CompilerParams(
            dimension_semantics=("parallel",),
            vmem_limit_bytes=vmem_limit),
    )(adj_p, x_p, support, sw_p)

    if not with_bn:
        return out_pre[:n, :f_out].astype(x.dtype)

    # Combine the tiny per-tile stats (training-mode BN, biased variance,
    # gamma=1, beta=0).  Padded rows contributed exactly zero, so divide by n.
    col_sum = jnp.sum(stats[:, 0, :], axis=0)
    col_sumsq = jnp.sum(stats[:, 1, :], axis=0)
    mean = col_sum / n
    var = jnp.maximum(col_sumsq / n - mean * mean, 0.0)
    inv_std = lax.rsqrt(var + bn_eps)
    mean2 = mean.reshape(1, f_out_p)
    inv2 = inv_std.reshape(1, f_out_p)

    # Pass C: trivial row-tiled normalize.
    out_bn = pl.pallas_call(
        _bn_norm_kernel,
        out_shape=jax.ShapeDtypeStruct((n_p, f_out_p), x.dtype),
        grid=(n_tiles,),
        in_specs=[pl.BlockSpec((tm, f_out_p), lambda i: (i, 0)),
                  pl.BlockSpec((1, f_out_p), lambda i: (0, 0)),
                  pl.BlockSpec((1, f_out_p), lambda i: (0, 0))],
        out_specs=pl.BlockSpec((tm, f_out_p), lambda i: (i, 0)),
        compiler_params=pltpu.CompilerParams(
            dimension_semantics=("parallel",),
            vmem_limit_bytes=vmem_limit),
    )(out_pre, mean2, inv2)

    return out_bn[:n, :f_out]


# ----------------------------------------------------------------------------
# Pure-JAX references (mirror the PyTorch module)
# ----------------------------------------------------------------------------
def _ortho_trans_ref(weight, T=5, norm_groups=1, eps=1e-5):
    g = norm_groups
    c = weight.shape[0] // g
    Z = weight.reshape(g, c, -1).astype(jnp.float32)
    Zc = Z - Z.mean(axis=-1, keepdims=True)
    S = jnp.matmul(Zc, jnp.swapaxes(Zc, 1, 2))
    eye = jnp.broadcast_to(jnp.eye(c, dtype=S.dtype), S.shape)
    S = S + eps * eye
    norm_S = jnp.sqrt(jnp.sum(S * S, axis=(1, 2), keepdims=True))
    S = S / norm_S
    B = eye
    for _ in range(T):
        B3 = jnp.matmul(jnp.matmul(B, B), B)
        B = 1.5 * B - 0.5 * jnp.matmul(B3, S)
    W = jnp.matmul(B, Zc) / jnp.sqrt(norm_S)
    return W.reshape(weight.shape).astype(weight.dtype)


def _gcn_forward_ref(x, adj, weight, self_weight, *, weight_beta, T2, group2,
                     with_bn=True):
    f_in = weight.shape[0]
    we = weight_beta * weight + (1.0 - weight_beta) * jnp.eye(
        f_in, weight.shape[1], dtype=weight.dtype)
    t = _ortho_trans_ref(we, T=T2, norm_groups=group2)
    support = x @ t
    out = adj @ support + x @ self_weight
    if with_bn:
        mu = out.mean(axis=0, keepdims=True)
        var = ((out - mu) ** 2).mean(axis=0, keepdims=True)
        out = (out - mu) / jnp.sqrt(var + 1e-5)
    return out


# ----------------------------------------------------------------------------
if __name__ == "__main__":
    key = jax.random.PRNGKey(0)
    k1, k2, k3, k4 = jax.random.split(key, 4)

    n_nodes = 16
    in_features = out_features = 32           # Ortho path requires square weight
    T2, group2 = 5, 2
    weight_beta = 0.5

    x = jax.random.normal(k1, (n_nodes, in_features), dtype=jnp.float32)

    stdv = 1.0 / math.sqrt(out_features)
    weight = jax.random.uniform(k2, (in_features, out_features),
                                dtype=jnp.float32, minval=-stdv, maxval=stdv)
    self_weight = jax.random.uniform(k3, (in_features, out_features),
                                     dtype=jnp.float32, minval=-stdv, maxval=stdv)

    # Symmetric, normalized dense adjacency (spmm treated as dense matmul).
    a = (jax.random.uniform(k4, (n_nodes, n_nodes)) < 0.3).astype(jnp.float32)
    a = jnp.minimum(jnp.maximum(a, a.T) + jnp.eye(n_nodes, dtype=jnp.float32), 1.0)
    dinv = 1.0 / jnp.sqrt(a.sum(axis=1))
    adj = a * dinv[:, None] * dinv[None, :]

    # Check the Ortho_Trans kernel on its own.
    we = weight_beta * weight + (1.0 - weight_beta) * jnp.eye(in_features,
                                                              dtype=jnp.float32)
    t_ker = jax.block_until_ready(ortho_trans(we, T=T2, norm_groups=group2))
    t_ref = jax.block_until_ready(_ortho_trans_ref(we, T=T2, norm_groups=group2))
    np.testing.assert_allclose(np.asarray(t_ker), np.asarray(t_ref),
                               rtol=2e-4, atol=2e-4)

    # Full forward pass.
    out = jax.block_until_ready(
        gcn_ortho_forward(x, adj, weight, self_weight,
                          weight_beta=weight_beta, T2=T2, group2=group2))
    out_ref = jax.block_until_ready(
        _gcn_forward_ref(x, adj, weight, self_weight,
                         weight_beta=weight_beta, T2=T2, group2=group2))
    np.testing.assert_allclose(np.asarray(out), np.asarray(out_ref),
                               rtol=1e-3, atol=1e-3)

    print("KERNEL_OK")
</pallas_src>

<mosaic_0001>
module attributes {stable_mosaic.version = 11 : i64} {
  func.func @_ortho_trans_kernel(%arg0: i32, %arg1: memref<1x16x32xf32, #tpu.memory_space<vmem>>, %arg2: memref<1x16x32xf32, #tpu.memory_space<vmem>>) attributes {dimension_semantics = [#tpu.dimension_semantics<parallel>], iteration_bounds = array<i64: 2>, scalar_prefetch = 0 : i64, scratch_operands = 0 : i64, tpu.core_type = #tpu.core_type<tc>, window_params = [{transform_indices = @transform_0, window_bounds = array<i64: 1, 16, 32>}, {transform_indices = @transform_1, window_bounds = array<i64: 1, 16, 32>}]} {
    %c0 = arith.constant 0 : index
    %c0_0 = arith.constant 0 : index
    %c0_1 = arith.constant 0 : index
    %0 = vector.load %arg1[%c0, %c0_0, %c0_1] : memref<1x16x32xf32, #tpu.memory_space<vmem>>, vector<1x16x32xf32>
    %cst = arith.constant dense<0.000000e+00> : vector<1x16xf32>
    %1 = vector.multi_reduction <add>, %0, %cst [2] : vector<1x16x32xf32> to vector<1x16xf32>
    %2 = vector.shape_cast %1 : vector<1x16xf32> to vector<1x16x1xf32>
    %cst_2 = arith.constant 3.125000e-02 : f32
    %3 = vector.broadcast %cst_2 : f32 to vector<1x16x1xf32>
    %4 = arith.mulf %2, %3 : vector<1x16x1xf32>
    %5 = vector.broadcast %4 : vector<1x16x1xf32> to vector<1x16x32xf32>
    %6 = arith.subf %0, %5 : vector<1x16x32xf32>
    %cst_3 = arith.constant dense<0.000000e+00> : vector<1x16x16xf32>
    %7 = tpu.matmul %6, %6, %cst_3 {dimension_numbers = #tpu.dot_dimension_numbers<[2], [2], [1], [1], [0, 0, 0, 1, 1, 1], [0], [0]>} : vector<1x16x32xf32>, vector<1x16x32xf32>, vector<1x16x16xf32> -> vector<1x16x16xf32>
    %8 = tpu.iota {dimensions = array<i32: 0>} : vector<16x16xi32>
    %9 = tpu.iota {dimensions = array<i32: 1>} : vector<16x16xi32>
    %10 = arith.cmpi eq, %8, %9 : vector<16x16xi32>
    %11 = arith.extui %10 : vector<16x16xi1> to vector<16x16xi32>
    %12 = arith.sitofp %11 : vector<16x16xi32> to vector<16x16xf32>
    %13 = vector.shape_cast %12 : vector<16x16xf32> to vector<1x16x16xf32>
    %cst_4 = arith.constant 9.99999974E-6 : f32
    %14 = vector.broadcast %cst_4 : f32 to vector<1x16x16xf32>
    %15 = arith.mulf %14, %13 : vector<1x16x16xf32>
    %16 = arith.addf %7, %15 : vector<1x16x16xf32>
    %17 = arith.mulf %16, %16 : vector<1x16x16xf32>
    %cst_5 = arith.constant dense<0.000000e+00> : vector<1xf32>
    %18 = vector.multi_reduction <add>, %17, %cst_5 [1, 2] : vector<1x16x16xf32> to vector<1xf32>
    %19 = vector.shape_cast %18 : vector<1xf32> to vector<1x1x1xf32>
    %20 = math.rsqrt %19 : vector<1x1x1xf32>
    %21 = vector.broadcast %20 : vector<1x1x1xf32> to vector<1x16x16xf32>
    %22 = arith.mulf %16, %21 : vector<1x16x16xf32>
    %23 = vector.shape_cast %12 : vector<16x16xf32> to vector<1x16x16xf32>
    %cst_6 = arith.constant 1.500000e+00 : f32
    %24 = vector.broadcast %cst_6 : f32 to vector<1x16x16xf32>
    %25 = arith.mulf %24, %23 : vector<1x16x16xf32>
    %cst_7 = arith.constant 5.000000e-01 : f32
    %26 = vector.broadcast %cst_7 : f32 to vector<1x16x16xf32>
    %27 = arith.mulf %26, %22 : vector<1x16x16xf32>
    %28 = arith.subf %25, %27 : vector<1x16x16xf32>
    %cst_8 = arith.constant dense<0.000000e+00> : vector<1x16x16xf32>
    %29 = tpu.matmul %28, %28, %cst_8 {dimension_numbers = #tpu.dot_dimension_numbers<[2], [1], [1], [2], [0, 0, 0, 1, 1, 2], [0], [0]>} : vector<1x16x16xf32>, vector<1x16x16xf32>, vector<1x16x16xf32> -> vector<1x16x16xf32>
    %cst_9 = arith.constant dense<0.000000e+00> : vector<1x16x16xf32>
    %30 = tpu.matmul %28, %22, %cst_9 {dimension_numbers = #tpu.dot_dimension_numbers<[2], [1], [1], [2], [0, 0, 0, 1, 1, 2], [0], [0]>} : vector<1x16x16xf32>, vector<1x16x16xf32>, vector<1x16x16xf32> -> vector<1x16x16xf32>
    %cst_10 = arith.constant 1.500000e+00 : f32
    %31 = vector.broadcast %cst_10 : f32 to vector<1x16x16xf32>
    %32 = arith.mulf %31, %28 : vector<1x16x16xf32>
    %cst_11 = arith.constant dense<0.000000e+00> : vector<1x16x16xf32>
    %33 = tpu.matmul %29, %30, %cst_11 {dimension_numbers = #tpu.dot_dimension_numbers<[2], [1], [1], [2], [0, 0, 0, 1, 1, 2], [0], [0]>} : vector<1x16x16xf32>, vector<1x16x16xf32>, vector<1x16x16xf32> -> vector<1x16x16xf32>
    %cst_12 = arith.constant 5.000000e-01 : f32
    %34 = vector.broadcast %cst_12 : f32 to vector<1x16x16xf32>
    %35 = arith.mulf %34, %33 : vector<1x16x16xf32>
    %36 = arith.subf %32, %35 : vector<1x16x16xf32>
    %cst_13 = arith.constant dense<0.000000e+00> : vector<1x16x16xf32>
    %37 = tpu.matmul %36, %36, %cst_13 {dimension_numbers = #tpu.dot_dimension_numbers<[2], [1], [1], [2], [0, 0, 0, 1, 1, 2], [0], [0]>} : vector<1x16x16xf32>, vector<1x16x16xf32>, vector<1x16x16xf32> -> vector<1x16x16xf32>
    %cst_14 = arith.constant dense<0.000000e+00> : vector<1x16x16xf32>
    %38 = tpu.matmul %36, %22, %cst_14 {dimension_numbers = #tpu.dot_dimension_numbers<[2], [1], [1], [2], [0, 0, 0, 1, 1, 2], [0], [0]>} : vector<1x16x16xf32>, vector<1x16x16xf32>, vector<1x16x16xf32> -> vector<1x16x16xf32>
    %cst_15 = arith.constant 1.500000e+00 : f32
    %39 = vector.broadcast %cst_15 : f32 to vector<1x16x16xf32>
    %40 = arith.mulf %39, %36 : vector<1x16x16xf32>
    %cst_16 = arith.constant dense<0.000000e+00> : vector<1x16x16xf32>
    %41 = tpu.matmul %37, %38, %cst_16 {dimension_numbers = #tpu.dot_dimension_numbers<[2], [1], [1], [2], [0, 0, 0, 1, 1, 2], [0], [0]>} : vector<1x16x16xf32>, vector<1x16x16xf32>, vector<1x16x16xf32> -> vector<1x16x16xf32>
    %cst_17 = arith.constant 5.000000e-01 : f32
    %42 = vector.broadcast %cst_17 : f32 to vector<1x16x16xf32>
    %43 = arith.mulf %42, %41 : vector<1x16x16xf32>
    %44 = arith.subf %40, %43 : vector<1x16x16xf32>
    %cst_18 = arith.constant dense<0.000000e+00> : vector<1x16x16xf32>
    %45 = tpu.matmul %44, %44, %cst_18 {dimension_numbers = #tpu.dot_dimension_numbers<[2], [1], [1], [2], [0, 0, 0, 1, 1, 2], [0], [0]>} : vector<1x16x16xf32>, vector<1x16x16xf32>, vector<1x16x16xf32> -> vector<1x16x16xf32>
    %cst_19 = arith.constant dense<0.000000e+00> : vector<1x16x16xf32>
    %46 = tpu.matmul %44, %22, %cst_19 {dimension_numbers = #tpu.dot_dimension_numbers<[2], [1], [1], [2], [0, 0, 0, 1, 1, 2], [0], [0]>} : vector<1x16x16xf32>, vector<1x16x16xf32>, vector<1x16x16xf32> -> vector<1x16x16xf32>
    %cst_20 = arith.constant 1.500000e+00 : f32
    %47 = vector.broadcast %cst_20 : f32 to vector<1x16x16xf32>
    %48 = arith.mulf %47, %44 : vector<1x16x16xf32>
    %cst_21 = arith.constant dense<0.000000e+00> : vector<1x16x16xf32>
    %49 = tpu.matmul %45, %46, %cst_21 {dimension_numbers = #tpu.dot_dimension_numbers<[2], [1], [1], [2], [0, 0, 0, 1, 1, 2], [0], [0]>} : vector<1x16x16xf32>, vector<1x16x16xf32>, vector<1x16x16xf32> -> vector<1x16x16xf32>
    %cst_22 = arith.constant 5.000000e-01 : f32
    %50 = vector.broadcast %cst_22 : f32 to vector<1x16x16xf32>
    %51 = arith.mulf %50, %49 : vector<1x16x16xf32>
    %52 = arith.subf %48, %51 : vector<1x16x16xf32>
    %cst_23 = arith.constant dense<0.000000e+00> : vector<1x16x16xf32>
    %53 = tpu.matmul %52, %52, %cst_23 {dimension_numbers = #tpu.dot_dimension_numbers<[2], [1], [1], [2], [0, 0, 0, 1, 1, 2], [0], [0]>} : vector<1x16x16xf32>, vector<1x16x16xf32>, vector<1x16x16xf32> -> vector<1x16x16xf32>
    %cst_24 = arith.constant dense<0.000000e+00> : vector<1x16x16xf32>
    %54 = tpu.matmul %52, %22, %cst_24 {dimension_numbers = #tpu.dot_dimension_numbers<[2], [1], [1], [2], [0, 0, 0, 1, 1, 2], [0], [0]>} : vector<1x16x16xf32>, vector<1x16x16xf32>, vector<1x16x16xf32> -> vector<1x16x16xf32>
    %cst_25 = arith.constant 1.500000e+00 : f32
    %55 = vector.broadcast %cst_25 : f32 to vector<1x16x16xf32>
    %56 = arith.mulf %55, %52 : vector<1x16x16xf32>
    %cst_26 = arith.constant dense<0.000000e+00> : vector<1x16x16xf32>
    %57 = tpu.matmul %53, %54, %cst_26 {dimension_numbers = #tpu.dot_dimension_numbers<[2], [1], [1], [2], [0, 0, 0, 1, 1, 2], [0], [0]>} : vector<1x16x16xf32>, vector<1x16x16xf32>, vector<1x16x16xf32> -> vector<1x16x16xf32>
    %cst_27 = arith.constant 5.000000e-01 : f32
    %58 = vector.broadcast %cst_27 : f32 to vector<1x16x16xf32>
    %59 = arith.mulf %58, %57 : vector<1x16x16xf32>
    %60 = arith.subf %56, %59 : vector<1x16x16xf32>
    %61 = math.sqrt %20 : vector<1x1x1xf32>
    %62 = vector.broadcast %61 : vector<1x1x1xf32> to vector<1x16x16xf32>
    %63 = arith.mulf %60, %62 : vector<1x16x16xf32>
    %cst_28 = arith.constant dense<0.000000e+00> : vector<1x16x32xf32>
    %64 = tpu.matmul %63, %6, %cst_28 {dimension_numbers = #tpu.dot_dimension_numbers<[2], [1], [1], [2], [0, 0, 0, 1, 1, 2], [0], [0]>} : vector<1x16x16xf32>, vector<1x16x32xf32>, vector<1x16x32xf32> -> vector<1x16x32xf32>
    %c0_29 = arith.constant 0 : index
    %c0_30 = arith.constant 0 : index
    %c0_31 = arith.constant 0 : index
    %65 = vector.load %arg2[%c0_29, %c0_30, %c0_31] : memref<1x16x32xf32, #tpu.memory_space<vmem>>, vector<1x16x32xf32>
    tpu.vector_store %arg2[%c0_29, %c0_30, %c0_31], %64 {strides = array<i32>} : memref<1x16x32xf32, #tpu.memory_space<vmem>>, vector<1x16x32xf32>,
    return
  }
  func.func @transform_0(%arg0: i32) -> (i32, i32, i32) {
    %c0_i32 = arith.constant 0 : i32
    %c0_i32_0 = arith.constant 0 : i32
    %c0_i32_1 = arith.constant 0 : i32
    return %arg0, %c0_i32, %c0_i32_0 : i32, i32, i32
  }
  func.func @transform_1(%arg0: i32) -> (i32, i32, i32) {
    %c0_i32 = arith.constant 0 : i32
    %c0_i32_0 = arith.constant 0 : i32
    %c0_i32_1 = arith.constant 0 : i32
    return %arg0, %c0_i32, %c0_i32_0 : i32, i32, i32
  }
}

</mosaic_0001>

<llo_original>
// kernel: tpu_custom_call.1
$region0: #{tpu_custom_call.1}
  #allocation0 [shape = 'u32[]', space=smem, size = 0x4, offset = 0x4, fixed_abs, tag = 'smem constant byte address 0x4 - core index']
  #allocation1 [shape = 'u32[144,128]{1,0:T(1,128)}', space=vmem, size = 0x12000, scoped, tag = 'internal scratch']
  %s0 = inlined_call_operand.hbm [shape: f32[2,16,32], index: 0, kind: input, shape index: {}]
  %s1 = inlined_call_operand.hbm [shape: f32[2,16,32], index: 1, kind: output, shape index: {}]
  %s2 = sld [smem:[#allocation0]]
  $region41: #{tpu_custom_call.1} parent=0
    _
  %s4 = ssub.s32 1, %s2
  %s5 = scalar_select 0, %s4, %s2
  $region1: #{tpu_custom_call.1} parent=0
    #allocation2 [shape = 'u8[16384]{0}', space=vmem, size = 0x4000, scoped, tag = 'input window, operand 0']
    #allocation3 [shape = 's32[2]{0}', space=sflag, size = 0x8, scoped, tag = 'scoped memory for tpu_custom_call.1']
    #allocation4 [shape = 's32[2]{0}', space=sflag, size = 0x8, scoped, tag = 'scoped memory for tpu_custom_call.1']
    #allocation5 [shape = 'u8[16384]{0}', space=vmem, size = 0x4000, scoped, tag = 'output window, operand 0']
    %6 = vsyncpa [#allocation3], 0
    %s7 = scalar_lea.sflag [#allocation3], 1
    %8 = vsyncpa %s7, 0
    %9 = vsyncpa [#allocation4], 0
    %s10 = scalar_lea.sflag [#allocation4], 1
    %11 = vsyncpa %s10, 0
    loop: start=0, step=1, limit=4
    $region2: #{tpu_custom_call.1} parent=1 // loop_pre_header
      _
    $region3: #{tpu_custom_call.1} parent=1 // loop_header
      %s13 = sphi 0, %s17
      %p14 = scmp.ge.s32.totalorder %s13, 4
      %s23 = sphi 0, %s25
      %s26 = sphi 0, %s23
      %s27 = sphi 0, %s26
      %s43 = sphi 0, %s27
      %s49 = sphi 0, %s51
      %s52 = sphi 0, %s49
      %s53 = sphi 0, %s52
      %s69 = sphi 0, %s53
    $region4: #{tpu_custom_call.1} parent=1 // loop_header_branch
      %16 = sbr.rel (%p14) target = $region8
    $region5: #{tpu_custom_call.1} parent=1 // loop_body
      %s18 = ssub.s32 %s13, 1
      %s19 = ssub.s32 %s13, 2
      %s20 = sadd.s32 %s13, 1
      %s21 = ssub.s32 %s13, %s20
      %p22 = scmp.eq.s32.totalorder %s21, 0
      %s24 = sadd.s32 %s23, 1
      %s25 = scalar_select %p22, %s23, %s24
      %p28 = pneg %p22
      %p29 = scmp.eq.s32.totalorder %s13, 1
      %p30 = por %p28, %p29
      %p31 = scmp.ne.s32.totalorder %s23, %s26
      %p32 = scmp.eq.s32.totalorder %s13, 0
      %p33 = por %p31, %p32
      %p34 = scmp.ne.s32.totalorder %s23, %s26
      %p35 = scmp.eq.s32.totalorder %s18, 1
      %p36 = por %p34, %p35
      %p37 = scmp.ne.s32.totalorder %s26, %s27
      %p38 = scmp.eq.s32.totalorder %s18, 0
      %p39 = por %p37, %p38
      %p40 = scmp.ne.s32.totalorder %s26, %s27
      %p41 = scmp.eq.s32.totalorder %s19, 1
      %p42 = por %p40, %p41
      %p44 = scmp.ne.s32.totalorder %s27, %s43
      %p45 = scmp.eq.s32.totalorder %s19, 0
      %p46 = por %p44, %p45
      %s47 = ssub.s32 %s13, %s20
      %p48 = scmp.eq.s32.totalorder %s47, 0
      %s50 = sadd.s32 %s49, 1
      %s51 = scalar_select %p48, %s49, %s50
      %p54 = pneg %p48
      %p55 = scmp.eq.s32.totalorder %s13, 1
      %p56 = por %p54, %p55
      %p57 = scmp.ne.s32.totalorder %s49, %s52
      %p58 = scmp.eq.s32.totalorder %s13, 0
      %p59 = por %p57, %p58
      %p60 = scmp.ne.s32.totalorder %s49, %s52
      %p61 = scmp.eq.s32.totalorder %s18, 1
      %p62 = por %p60, %p61
      %p63 = scmp.ne.s32.totalorder %s52, %s53
      %p64 = scmp.eq.s32.totalorder %s18, 0
      %p65 = por %p63, %p64
      %p66 = scmp.ne.s32.totalorder %s52, %s53
      %p67 = scmp.eq.s32.totalorder %s19, 1
      %p68 = por %p66, %p67
      %p70 = scmp.ne.s32.totalorder %s53, %s69
      %p71 = scmp.eq.s32.totalorder %s19, 0
      %p72 = por %p70, %p71
      %p73 = scmp.le.s32.totalorder 1, %s13
      %p74 = scmp.lt.s32.totalorder %s13, 3
      %p75 = pnand %p73, %p74
      %p76 = pneg %p75
      // Predicated region
      $region9: #{tpu_custom_call.1} parent=5 // pred_check
        _
      $region10: #{tpu_custom_call.1} parent=5 // pred_check_branch
        %78 = sbr.rel (%p75) target = $region12
      $region11: #{tpu_custom_call.1} parent=5 // pred_region
        %s79 = ssub.s32 %s13, 1
      $region12: #{tpu_custom_call.1} parent=5 // pred_fallthru
        _
      %p80 = scmp.lt.s32.totalorder %s13, 2
      // Predicated region
      $region13: #{tpu_custom_call.1} parent=5 // pred_check
        %p81 = pneg %p80
      $region14: #{tpu_custom_call.1} parent=5 // pred_check_branch
        %83 = sbr.rel (%p81) target = $region16
      $region15: #{tpu_custom_call.1} parent=5 // pred_region
        // Predicated region
        $region17: #{tpu_custom_call.1} parent=15 // pred_check
          %p84 = pneg %p33
        $region18: #{tpu_custom_call.1} parent=15 // pred_check_branch
          %86 = sbr.rel (%p84) target = $region20
        $region19: #{tpu_custom_call.1} parent=15 // pred_region
          %s87 = sand.u32 %s23, 1
          %s88 = scalar_lea.sflag [#allocation3], %s87
          %s89 = sand.u32 %s23, 1
          %s90 = smul.addr %s89, 16
          %s91 = scalar_lea.vmem [#allocation2], %s90
          %s93 = ssub.s32 256, 256
          %94 = vsyncadd %s88, %s93
          %s95 = smul.addr %s13, 2
          %s96 = smul.addr %s95, 128
          %s97 = scalar_lea.hbm %s0, %s96
          %s98 = sshll.u32 %s91, 4
          %s99 = int_to_ptr.vmem [resolvable:$true] %s98
          %104 = dma.hbm_to_vmem [thread:$0]  %s97, 256, %s99, %s88, 128, 128, 8
        $region20: #{tpu_custom_call.1} parent=15 // pred_fallthru
          _
      $region16: #{tpu_custom_call.1} parent=5 // pred_fallthru
        _
      %p105 = scmp.le.s32.totalorder 1, %s13
      %p106 = scmp.lt.s32.totalorder %s13, 3
      %p107 = pnand %p105, %p106
      %p108 = pneg %p107
      // Predicated region
      $region21: #{tpu_custom_call.1} parent=5 // pred_check
        _
      $region22: #{tpu_custom_call.1} parent=5 // pred_check_branch
        %110 = sbr.rel (%p107) target = $region24
      $region23: #{tpu_custom_call.1} parent=5 // pred_region
        %s111 = ssub.s32 %s13, 1
        %s112 = sand.u32 %s26, 1
        %s113 = scalar_lea.sflag [#allocation3], %s112
        %s114 = sand.u32 %s26, 1
        %s115 = smul.addr %s114, 16
        %s116 = scalar_lea.vmem [#allocation2], %s115
        // Predicated region
        $region25: #{tpu_custom_call.1} parent=23 // pred_check
          %p117 = pneg %p39
        $region26: #{tpu_custom_call.1} parent=23 // pred_check_branch
          %119 = sbr.rel (%p117) target = $region28
        $region27: #{tpu_custom_call.1} parent=23 // pred_region
          %120 = dma.done %s113, 256
        $region28: #{tpu_custom_call.1} parent=23 // pred_fallthru
          _
        %s121 = sand.u32 %s26, 1
        %s122 = scalar_lea.sflag [#allocation3], %s121
        %s123 = sand.u32 %s26, 1
        %s124 = smul.addr %s123, 16
        %s125 = scalar_lea.vmem [#allocation2], %s124
        %p126 = pneg %p39
        %p127 = pneg %p36
        %p128 = pneg %p65
        %p129 = pneg %p62
        %s130 = sand.u32 %s52, 1
        %s131 = scalar_lea.sflag [#allocation4], %s130
        %s132 = sand.u32 %s52, 1
        %s133 = smul.addr %s132, 16
        %s134 = scalar_lea.vmem [#allocation5], %s133
        %v135 = vld [vmem:[%s116] sm:$0xff]
        %v136 = vld [vmem:[%s116 + $0x8] sm:$0xff]
        %vm137 = vcmask 261120
        %v138 = vsel %vm137, %v135, 0.0
        %139 = vadd.xlane.f32.xlu0 %v138
        %v140 = vpop.xlane.xlu0 %139
        %v141 = vsel %vm137, %v136, 0.0
        %142 = vadd.xlane.f32.xlu0 %v141
        %v143 = vpop.xlane.xlu0 %142
        %v144 = vmul.f32 %v140, 0.03125
        %v145 = vmul.f32 %v143, 0.03125
        %v146 = vsub.f32 %v135, %v144
        %v147 = vsub.f32 %v136, %v145
        %v148 = vlaneseq
        %v149 = vshrl.u32 %v148, 7
        %v150 = vadd.s32 %v149, 8
        %v151 = vlaneseq
        %v152 = vand.u32 %v151, 127
        %vm153 = vcmp.eq.s32.totalorder %v149, %v152
        %vm154 = vcmp.eq.s32.totalorder %v150, %v152
        %v155 = vsel %vm153, 1, 0
        %v156 = vsel %vm154, 1, 0
        %v157 = vcvt.s32.f32 %v155
        %v158 = vcvt.s32.f32 %v156
        %v159 = vmul.f32 %v157, 1e-05
        %v160 = vmul.f32 %v158, 1e-05
        %v162 = vsel %vm137, %v146, 0
        %v165 = vsel %vm137, %v147, 0
        %167 = vmatprep.subr.mxu0 0.0
        %168 = vmatpush1.xpose.msra.mxu0 0.0
        %169 = vmatprep.subr.mxu0 0.0
        %170 = vmatpush1.xpose.msra.mxu0 0.0
        %171 = vmatprep.subr.mxu0 0.0
        %172 = vmatpush1.xpose.msra.mxu0 0.0
        %173 = vmatprep.subr.mxu0 0.0
        %174 = vmatpush1.xpose.msra.mxu0 0.0
        %175 = vmatprep.subr.mxu0 0.0
        %176 = vmatpush1.xpose.msra.mxu0 0.0
        %177 = vmatprep.subr.mxu0 0.0
        %178 = vmatpush1.xpose.msra.mxu0 0.0
        %179 = vmatprep.subr.mxu0 0.0
        %180 = vmatpush1.xpose.msra.mxu0 0.0
        %181 = vmatprep.subr.mxu0 0.0
        %182 = vmatpush1.xpose.msra.mxu0 0.0
        %183 = vmatprep.subr.mxu0 0.0
        %184 = vmatpush1.xpose.msra.mxu0 0.0
        %185 = vmatprep.subr.mxu0 0.0
        %186 = vmatpush1.xpose.msra.mxu0 0.0
        %187 = vmatprep.subr.mxu0 0.0
        %188 = vmatpush1.xpose.msra.mxu0 0.0
        %189 = vmatprep.subr.mxu0 0.0
        %190 = vmatpush1.xpose.msra.mxu0 0.0
        %191 = vmatprep.subr.mxu0 0.0
        %192 = vmatpush1.xpose.msra.mxu0 0.0
        %193 = vmatprep.subr.mxu0 0.0
        %194 = vmatpush1.xpose.msra.mxu0 0.0
        %195 = vmatprep.subr.mxu0 0.0
        %196 = vmatpush1.xpose.msra.mxu0 %v165
        %197 = vmatprep.subr.mxu0 0.0
        %198 = vmatpush1.xpose.msra.mxu0 %v162
        %199 = vmatprep.subr.mxu0 0.0
        %200 = vmatpush2.xpose.msra.mxu0 0.0
        %201 = vmatprep.subr.mxu0 0.0
        %202 = vmatpush2.xpose.msra.mxu0 0.0
        %203 = vmatprep.subr.mxu0 0.0
        %204 = vmatpush2.xpose.msra.mxu0 0.0
        %205 = vmatprep.subr.mxu0 0.0
        %206 = vmatpush2.xpose.msra.mxu0 0.0
        %207 = vmatprep.subr.mxu0 0.0
        %208 = vmatpush2.xpose.msra.mxu0 0.0
        %209 = vmatprep.subr.mxu0 0.0
        %210 = vmatpush2.xpose.msra.mxu0 0.0
        %211 = vmatprep.subr.mxu0 0.0
        %212 = vmatpush2.xpose.msra.mxu0 0.0
        %213 = vmatprep.subr.mxu0 0.0
        %214 = vmatpush2.xpose.msra.mxu0 0.0
        %215 = vmatprep.subr.mxu0 0.0
        %216 = vmatpush2.xpose.msra.mxu0 0.0
        %217 = vmatprep.subr.mxu0 0.0
        %218 = vmatpush2.xpose.msra.mxu0 0.0
        %219 = vmatprep.subr.mxu0 0.0
        %220 = vmatpush2.xpose.msra.mxu0 0.0
        %221 = vmatprep.subr.mxu0 0.0
        %222 = vmatpush2.xpose.msra.mxu0 0.0
        %223 = vmatprep.subr.mxu0 0.0
        %224 = vmatpush2.xpose.msra.mxu0 0.0
        %225 = vmatprep.subr.mxu0 0.0
        %226 = vmatpush2.xpose.msra.mxu0 0.0
        %227 = vmatprep.subr.mxu0 0.0
        %228 = vmatpush2.xpose.msra.mxu0 0.0
        %229 = vmatprep.subr.mxu0 0.0
        %230 = vmatpush2.xpose.msra.mxu0 0.0
        %231 = vmatprep.mubr.f32.mxu0 0.0
        %232 = vmatmul.mubr.f32.gmra.mxu0 %v162
        %v233 = vpop.f32.mrf.mxu0
        %v234 = vadd.f32 %v159, %v233
        %v235 = vpop.f32.mrf.mxu0
        %236 = vmatprep.mubr.f32.mxu0 0.0
        %237 = vmatmul.mubr.f32.gmra.mxu0 %v165
        %v238 = vpop.f32.mrf.mxu0
        %v239 = vadd.f32 %v160, %v238
        %v240 = vpop.f32.mrf.mxu0
        %241 = vdwg.mxu0
        %v242 = vmul.f32 %v234, %v234
        %v243 = vmul.f32 %v239, %v239
        %vm244 = vcmask 130048
        %v245 = vsel %vm244, %v242, 0.0
        %v246 = vsel %vm244, %v243, 0.0
        %v247 = vadd.f32 %v245, %v246
        %248 = vadd.xlane.f32.xlu0 %v247
        %v249 = vpop.xlane.xlu0 %248
        %v250 = vrot.slane %v249, 4
        %v251 = vadd.f32 %v249, %v250
        %v252 = vrot.slane %v251, 2
        %v253 = vadd.f32 %v251, %v252
        %v254 = vrot.slane %v253, 1
        %v255 = vadd.f32 %v253, %v254
        %v256 = vrsqrt.pop %v255
        %v257 = vmul.f32 %v234, %v256
        %v258 = vmul.f32 %v239, %v256
        %v259 = vmul.f32 %v157, 1.5
        %v260 = vmul.f32 %v158, 1.5
        %v261 = vmul.f32 %v257, 0.5
        %v262 = vmul.f32 %v258, 0.5
        %v263 = vsub.f32 %v259, %v261
        %v264 = vsub.f32 %v260, %v262
        %v266 = vsel %vm244, %v263, 0
        %v269 = vsel %vm244, %v264, 0
        %271 = vmatprep.subr.mxu0 0.0
        %272 = vmatpush1.msra.mxu0 0.0
        %273 = vmatprep.subr.mxu0 0.0
        %274 = vmatpush1.msra.mxu0 0.0
        %275 = vmatprep.subr.mxu0 0.0
        %276 = vmatpush1.msra.mxu0 0.0
        %277 = vmatprep.subr.mxu0 0.0
        %278 = vmatpush1.msra.mxu0 0.0
        %279 = vmatprep.subr.mxu0 0.0
        %280 = vmatpush1.msra.mxu0 0.0
        %281 = vmatprep.subr.mxu0 0.0
        %282 = vmatpush1.msra.mxu0 0.0
        %283 = vmatprep.subr.mxu0 0.0
        %284 = vmatpush1.msra.mxu0 0.0
        %285 = vmatprep.subr.mxu0 0.0
        %286 = vmatpush1.msra.mxu0 0.0
        %287 = vmatprep.subr.mxu0 0.0
        %288 = vmatpush1.msra.mxu0 0.0
        %289 = vmatprep.subr.mxu0 0.0
        %290 = vmatpush1.msra.mxu0 0.0
        %291 = vmatprep.subr.mxu0 0.0
        %292 = vmatpush1.msra.mxu0 0.0
        %293 = vmatprep.subr.mxu0 0.0
        %294 = vmatpush1.msra.mxu0 0.0
        %295 = vmatprep.subr.mxu0 0.0
        %296 = vmatpush1.msra.mxu0 0.0
        %297 = vmatprep.subr.mxu0 0.0
        %298 = vmatpush1.msra.mxu0 0.0
        %299 = vmatprep.subr.mxu0 0.0
        %300 = vmatpush1.msra.mxu0 %v264
        %301 = vmatprep.subr.mxu0 0.0
        %302 = vmatpush1.msra.mxu0 %v263
        %303 = vmatprep.subr.mxu0 0.0
        %304 = vmatpush2.msra.mxu0 0.0
        %305 = vmatprep.subr.mxu0 0.0
        %306 = vmatpush2.msra.mxu0 0.0
        %307 = vmatprep.subr.mxu0 0.0
        %308 = vmatpush2.msra.mxu0 0.0
        %309 = vmatprep.subr.mxu0 0.0
        %310 = vmatpush2.msra.mxu0 0.0
        %311 = vmatprep.subr.mxu0 0.0
        %312 = vmatpush2.msra.mxu0 0.0
        %313 = vmatprep.subr.mxu0 0.0
        %314 = vmatpush2.msra.mxu0 0.0
        %315 = vmatprep.subr.mxu0 0.0
        %316 = vmatpush2.msra.mxu0 0.0
        %317 = vmatprep.subr.mxu0 0.0
        %318 = vmatpush2.msra.mxu0 0.0
        %319 = vmatprep.subr.mxu0 0.0
        %320 = vmatpush2.msra.mxu0 0.0
        %321 = vmatprep.subr.mxu0 0.0
        %322 = vmatpush2.msra.mxu0 0.0
        %323 = vmatprep.subr.mxu0 0.0
        %324 = vmatpush2.msra.mxu0 0.0
        %325 = vmatprep.subr.mxu0 0.0
        %326 = vmatpush2.msra.mxu0 0.0
        %327 = vmatprep.subr.mxu0 0.0
        %328 = vmatpush2.msra.mxu0 0.0
        %329 = vmatprep.subr.mxu0 0.0
        %330 = vmatpush2.msra.mxu0 0.0
        %331 = vmatprep.subr.mxu0 0.0
        %332 = vmatpush2.msra.mxu0 0.0
        %333 = vmatprep.subr.mxu0 0.0
        %334 = vmatpush2.msra.mxu0 0.0
        %335 = vmatprep.mubr.f32.mxu0 0.0
        %336 = vmatmul.mubr.f32.gmra.mxu0 %v266
        %v337 = vpop.f32.mrf.mxu0
        %v338 = vadd.f32 0.0, %v337
        %v339 = vpop.f32.mrf.mxu0
        %340 = vmatprep.mubr.f32.mxu0 0.0
        %341 = vmatmul.mubr.f32.gmra.mxu0 %v269
        %v342 = vpop.f32.mrf.mxu0
        %v343 = vadd.f32 0.0, %v342
        %v344 = vpop.f32.mrf.mxu0
        %345 = vdwg.mxu0
        %346 = vmatprep.subr.mxu0 0.0
        %347 = vmatpush1.msra.mxu0 0.0
        %348 = vmatprep.subr.mxu0 0.0
        %349 = vmatpush1.msra.mxu0 0.0
        %350 = vmatprep.subr.mxu0 0.0
        %351 = vmatpush1.msra.mxu0 0.0
        %352 = vmatprep.subr.mxu0 0.0
        %353 = vmatpush1.msra.mxu0 0.0
        %354 = vmatprep.subr.mxu0 0.0
        %355 = vmatpush1.msra.mxu0 0.0
        %356 = vmatprep.subr.mxu0 0.0
        %357 = vmatpush1.msra.mxu0 0.0
        %358 = vmatprep.subr.mxu0 0.0
        %359 = vmatpush1.msra.mxu0 0.0
        %360 = vmatprep.subr.mxu0 0.0
        %361 = vmatpush1.msra.mxu0 0.0
        %362 = vmatprep.subr.mxu0 0.0
        %363 = vmatpush1.msra.mxu0 0.0
        %364 = vmatprep.subr.mxu0 0.0
        %365 = vmatpush1.msra.mxu0 0.0
        %366 = vmatprep.subr.mxu0 0.0
        %367 = vmatpush1.msra.mxu0 0.0
        %368 = vmatprep.subr.mxu0 0.0
        %369 = vmatpush1.msra.mxu0 0.0
        %370 = vmatprep.subr.mxu0 0.0
        %371 = vmatpush1.msra.mxu0 0.0
        %372 = vmatprep.subr.mxu0 0.0
        %373 = vmatpush1.msra.mxu0 0.0
        %374 = vmatprep.subr.mxu0 0.0
        %375 = vmatpush1.msra.mxu0 %v258
        %376 = vmatprep.subr.mxu0 0.0
        %377 = vmatpush1.msra.mxu0 %v257
        %378 = vmatprep.subr.mxu0 0.0
        %379 = vmatpush2.msra.mxu0 0.0
        %380 = vmatprep.subr.mxu0 0.0
        %381 = vmatpush2.msra.mxu0 0.0
        %382 = vmatprep.subr.mxu0 0.0
        %383 = vmatpush2.msra.mxu0 0.0
        %384 = vmatprep.subr.mxu0 0.0
        %385 = vmatpush2.msra.mxu0 0.0
        %386 = vmatprep.subr.mxu0 0.0
        %387 = vmatpush2.msra.mxu0 0.0
        %388 = vmatprep.subr.mxu0 0.0
        %389 = vmatpush2.msra.mxu0 0.0
        %390 = vmatprep.subr.mxu0 0.0
        %391 = vmatpush2.msra.mxu0 0.0
        %392 = vmatprep.subr.mxu0 0.0
        %393 = vmatpush2.msra.mxu0 0.0
        %394 = vmatprep.subr.mxu0 0.0
        %395 = vmatpush2.msra.mxu0 0.0
        %396 = vmatprep.subr.mxu0 0.0
        %397 = vmatpush2.msra.mxu0 0.0
        %398 = vmatprep.subr.mxu0 0.0
        %399 = vmatpush2.msra.mxu0 0.0
        %400 = vmatprep.subr.mxu0 0.0
        %401 = vmatpush2.msra.mxu0 0.0
        %402 = vmatprep.subr.mxu0 0.0
        %403 = vmatpush2.msra.mxu0 0.0
        %404 = vmatprep.subr.mxu0 0.0
        %405 = vmatpush2.msra.mxu0 0.0
        %406 = vmatprep.subr.mxu0 0.0
        %407 = vmatpush2.msra.mxu0 0.0
        %408 = vmatprep.subr.mxu0 0.0
        %409 = vmatpush2.msra.mxu0 0.0
        %410 = vmatprep.mubr.f32.mxu0 0.0
        %411 = vmatmul.mubr.f32.gmra.mxu0 %v266
        %v412 = vpop.f32.mrf.mxu0
        %v413 = vadd.f32 0.0, %v412
        %v414 = vpop.f32.mrf.mxu0
        %415 = vmatprep.mubr.f32.mxu0 0.0
        %416 = vmatmul.mubr.f32.gmra.mxu0 %v269
        %v417 = vpop.f32.mrf.mxu0
        %v418 = vadd.f32 0.0, %v417
        %v419 = vpop.f32.mrf.mxu0
        %420 = vdwg.mxu0
        %v421 = vmul.f32 %v263, 1.5
        %v422 = vmul.f32 %v264, 1.5
        %v424 = vsel %vm244, %v338, 0
        %v427 = vsel %vm244, %v343, 0
        %429 = vmatprep.subr.mxu0 0.0
        %430 = vmatpush1.msra.mxu0 0.0
        %431 = vmatprep.subr.mxu0 0.0
        %432 = vmatpush1.msra.mxu0 0.0
        %433 = vmatprep.subr.mxu0 0.0
        %434 = vmatpush1.msra.mxu0 0.0
        %435 = vmatprep.subr.mxu0 0.0
        %436 = vmatpush1.msra.mxu0 0.0
        %437 = vmatprep.subr.mxu0 0.0
        %438 = vmatpush1.msra.mxu0 0.0
        %439 = vmatprep.subr.mxu0 0.0
        %440 = vmatpush1.msra.mxu0 0.0
        %441 = vmatprep.subr.mxu0 0.0
        %442 = vmatpush1.msra.mxu0 0.0
        %443 = vmatprep.subr.mxu0 0.0
        %444 = vmatpush1.msra.mxu0 0.0
        %445 = vmatprep.subr.mxu0 0.0
        %446 = vmatpush1.msra.mxu0 0.0
        %447 = vmatprep.subr.mxu0 0.0
        %448 = vmatpush1.msra.mxu0 0.0
        %449 = vmatprep.subr.mxu0 0.0
        %450 = vmatpush1.msra.mxu0 0.0
        %451 = vmatprep.subr.mxu0 0.0
        %452 = vmatpush1.msra.mxu0 0.0
        %453 = vmatprep.subr.mxu0 0.0
        %454 = vmatpush1.msra.mxu0 0.0
        %455 = vmatprep.subr.mxu0 0.0
        %456 = vmatpush1.msra.mxu0 0.0
        %457 = vmatprep.subr.mxu0 0.0
        %458 = vmatpush1.msra.mxu0 %v418
        %459 = vmatprep.subr.mxu0 0.0
        %460 = vmatpush1.msra.mxu0 %v413
        %461 = vmatprep.subr.mxu0 0.0
        %462 = vmatpush2.msra.mxu0 0.0
        %463 = vmatprep.subr.mxu0 0.0
        %464 = vmatpush2.msra.mxu0 0.0
        %465 = vmatprep.subr.mxu0 0.0
        %466 = vmatpush2.msra.mxu0 0.0
        %467 = vmatprep.subr.mxu0 0.0
        %468 = vmatpush2.msra.mxu0 0.0
        %469 = vmatprep.subr.mxu0 0.0
        %470 = vmatpush2.msra.mxu0 0.0
        %471 = vmatprep.subr.mxu0 0.0
        %472 = vmatpush2.msra.mxu0 0.0
        %473 = vmatprep.subr.mxu0 0.0
        %474 = vmatpush2.msra.mxu0 0.0
        %475 = vmatprep.subr.mxu0 0.0
        %476 = vmatpush2.msra.mxu0 0.0
        %477 = vmatprep.subr.mxu0 0.0
        %478 = vmatpush2.msra.mxu0 0.0
        %479 = vmatprep.subr.mxu0 0.0
        %480 = vmatpush2.msra.mxu0 0.0
        %481 = vmatprep.subr.mxu0 0.0
        %482 = vmatpush2.msra.mxu0 0.0
        %483 = vmatprep.subr.mxu0 0.0
        %484 = vmatpush2.msra.mxu0 0.0
        %485 = vmatprep.subr.mxu0 0.0
        %486 = vmatpush2.msra.mxu0 0.0
        %487 = vmatprep.subr.mxu0 0.0
        %488 = vmatpush2.msra.mxu0 0.0
        %489 = vmatprep.subr.mxu0 0.0
        %490 = vmatpush2.msra.mxu0 0.0
        %491 = vmatprep.subr.mxu0 0.0
        %492 = vmatpush2.msra.mxu0 0.0
        %493 = vmatprep.mubr.f32.mxu0 0.0
        %494 = vmatmul.mubr.f32.gmra.mxu0 %v424
        %v495 = vpop.f32.mrf.mxu0
        %v496 = vadd.f32 0.0, %v495
        %v497 = vpop.f32.mrf.mxu0
        %498 = vmatprep.mubr.f32.mxu0 0.0
        %499 = vmatmul.mubr.f32.gmra.mxu0 %v427
        %v500 = vpop.f32.mrf.mxu0
        %v501 = vadd.f32 0.0, %v500
        %v502 = vpop.f32.mrf.mxu0
        %503 = vdwg.mxu0
        %v504 = vmul.f32 %v496, 0.5
        %v505 = vmul.f32 %v501, 0.5
        %v506 = vsub.f32 %v421, %v504
        %v507 = vsub.f32 %v422, %v505
        %v509 = vsel %vm244, %v506, 0
        %v512 = vsel %vm244, %v507, 0
        %514 = vmatprep.subr.mxu0 0.0
        %515 = vmatpush1.msra.mxu0 0.0
        %516 = vmatprep.subr.mxu0 0.0
        %517 = vmatpush1.msra.mxu0 0.0
        %518 = vmatprep.subr.mxu0 0.0
        %519 = vmatpush1.msra.mxu0 0.0
        %520 = vmatprep.subr.mxu0 0.0
        %521 = vmatpush1.msra.mxu0 0.0
        %522 = vmatprep.subr.mxu0 0.0
        %523 = vmatpush1.msra.mxu0 0.0
        %524 = vmatprep.subr.mxu0 0.0
        %525 = vmatpush1.msra.mxu0 0.0
        %526 = vmatprep.subr.mxu0 0.0
        %527 = vmatpush1.msra.mxu0 0.0
        %528 = vmatprep.subr.mxu0 0.0
        %529 = vmatpush1.msra.mxu0 0.0
        %530 = vmatprep.subr.mxu0 0.0
        %531 = vmatpush1.msra.mxu0 0.0
        %532 = vmatprep.subr.mxu0 0.0
        %533 = vmatpush1.msra.mxu0 0.0
        %534 = vmatprep.subr.mxu0 0.0
        %535 = vmatpush1.msra.mxu0 0.0
        %536 = vmatprep.subr.mxu0 0.0
        %537 = vmatpush1.msra.mxu0 0.0
        %538 = vmatprep.subr.mxu0 0.0
        %539 = vmatpush1.msra.mxu0 0.0
        %540 = vmatprep.subr.mxu0 0.0
        %541 = vmatpush1.msra.mxu0 0.0
        %542 = vmatprep.subr.mxu0 0.0
        %543 = vmatpush1.msra.mxu0 %v507
        %544 = vmatprep.subr.mxu0 0.0
        %545 = vmatpush1.msra.mxu0 %v506
        %546 = vmatprep.subr.mxu0 0.0
        %547 = vmatpush2.msra.mxu0 0.0
        %548 = vmatprep.subr.mxu0 0.0
        %549 = vmatpush2.msra.mxu0 0.0
        %550 = vmatprep.subr.mxu0 0.0
        %551 = vmatpush2.msra.mxu0 0.0
        %552 = vmatprep.subr.mxu0 0.0
        %553 = vmatpush2.msra.mxu0 0.0
        %554 = vmatprep.subr.mxu0 0.0
        %555 = vmatpush2.msra.mxu0 0.0
        %556 = vmatprep.subr.mxu0 0.0
        %557 = vmatpush2.msra.mxu0 0.0
        %558 = vmatprep.subr.mxu0 0.0
        %559 = vmatpush2.msra.mxu0 0.0
        %560 = vmatprep.subr.mxu0 0.0
        %561 = vmatpush2.msra.mxu0 0.0
        %562 = vmatprep.subr.mxu0 0.0
        %563 = vmatpush2.msra.mxu0 0.0
        %564 = vmatprep.subr.mxu0 0.0
        %565 = vmatpush2.msra.mxu0 0.0
        %566 = vmatprep.subr.mxu0 0.0
        %567 = vmatpush2.msra.mxu0 0.0
        %568 = vmatprep.subr.mxu0 0.0
        %569 = vmatpush2.msra.mxu0 0.0
        %570 = vmatprep.subr.mxu0 0.0
        %571 = vmatpush2.msra.mxu0 0.0
        %572 = vmatprep.subr.mxu0 0.0
        %573 = vmatpush2.msra.mxu0 0.0
        %574 = vmatprep.subr.mxu0 0.0
        %575 = vmatpush2.msra.mxu0 0.0
        %576 = vmatprep.subr.mxu0 0.0
        %577 = vmatpush2.msra.mxu0 0.0
        %578 = vmatprep.mubr.f32.mxu0 0.0
        %579 = vmatmul.mubr.f32.gmra.mxu0 %v509
        %v580 = vpop.f32.mrf.mxu0
        %v581 = vadd.f32 0.0, %v580
        %v582 = vpop.f32.mrf.mxu0
        %583 = vmatprep.mubr.f32.mxu0 0.0
        %584 = vmatmul.mubr.f32.gmra.mxu0 %v512
        %v585 = vpop.f32.mrf.mxu0
        %v586 = vadd.f32 0.0, %v585
        %v587 = vpop.f32.mrf.mxu0
        %588 = vdwg.mxu0
        %589 = vmatprep.subr.mxu0 0.0
        %590 = vmatpush1.msra.mxu0 0.0
        %591 = vmatprep.subr.mxu0 0.0
        %592 = vmatpush1.msra.mxu0 0.0
        %593 = vmatprep.subr.mxu0 0.0
        %594 = vmatpush1.msra.mxu0 0.0
        %595 = vmatprep.subr.mxu0 0.0
        %596 = vmatpush1.msra.mxu0 0.0
        %597 = vmatprep.subr.mxu0 0.0
        %598 = vmatpush1.msra.mxu0 0.0
        %599 = vmatprep.subr.mxu0 0.0
        %600 = vmatpush1.msra.mxu0 0.0
        %601 = vmatprep.subr.mxu0 0.0
        %602 = vmatpush1.msra.mxu0 0.0
        %603 = vmatprep.subr.mxu0 0.0
        %604 = vmatpush1.msra.mxu0 0.0
        %605 = vmatprep.subr.mxu0 0.0
        %606 = vmatpush1.msra.mxu0 0.0
        %607 = vmatprep.subr.mxu0 0.0
        %608 = vmatpush1.msra.mxu0 0.0
        %609 = vmatprep.subr.mxu0 0.0
        %610 = vmatpush1.msra.mxu0 0.0
        %611 = vmatprep.subr.mxu0 0.0
        %612 = vmatpush1.msra.mxu0 0.0
        %613 = vmatprep.subr.mxu0 0.0
        %614 = vmatpush1.msra.mxu0 0.0
        %615 = vmatprep.subr.mxu0 0.0
        %616 = vmatpush1.msra.mxu0 0.0
        %617 = vmatprep.subr.mxu0 0.0
        %618 = vmatpush1.msra.mxu0 %v258
        %619 = vmatprep.subr.mxu0 0.0
        %620 = vmatpush1.msra.mxu0 %v257
        %621 = vmatprep.subr.mxu0 0.0
        %622 = vmatpush2.msra.mxu0 0.0
        %623 = vmatprep.subr.mxu0 0.0
        %624 = vmatpush2.msra.mxu0 0.0
        %625 = vmatprep.subr.mxu0 0.0
        %626 = vmatpush2.msra.mxu0 0.0
        %627 = vmatprep.subr.mxu0 0.0
        %628 = vmatpush2.msra.mxu0 0.0
        %629 = vmatprep.subr.mxu0 0.0
        %630 = vmatpush2.msra.mxu0 0.0
        %631 = vmatprep.subr.mxu0 0.0
        %632 = vmatpush2.msra.mxu0 0.0
        %633 = vmatprep.subr.mxu0 0.0
        %634 = vmatpush2.msra.mxu0 0.0
        %635 = vmatprep.subr.mxu0 0.0
        %636 = vmatpush2.msra.mxu0 0.0
        %637 = vmatprep.subr.mxu0 0.0
        %638 = vmatpush2.msra.mxu0 0.0
        %639 = vmatprep.subr.mxu0 0.0
        %640 = vmatpush2.msra.mxu0 0.0
        %641 = vmatprep.subr.mxu0 0.0
        %642 = vmatpush2.msra.mxu0 0.0
        %643 = vmatprep.subr.mxu0 0.0
        %644 = vmatpush2.msra.mxu0 0.0
        %645 = vmatprep.subr.mxu0 0.0
        %646 = vmatpush2.msra.mxu0 0.0
        %647 = vmatprep.subr.mxu0 0.0
        %648 = vmatpush2.msra.mxu0 0.0
        %649 = vmatprep.subr.mxu0 0.0
        %650 = vmatpush2.msra.mxu0 0.0
        %651 = vmatprep.subr.mxu0 0.0
        %652 = vmatpush2.msra.mxu0 0.0
        %653 = vmatprep.mubr.f32.mxu0 0.0
        %654 = vmatmul.mubr.f32.gmra.mxu0 %v509
        %v655 = vpop.f32.mrf.mxu0
        %v656 = vadd.f32 0.0, %v655
        %v657 = vpop.f32.mrf.mxu0
        %658 = vmatprep.mubr.f32.mxu0 0.0
        %659 = vmatmul.mubr.f32.gmra.mxu0 %v512
        %v660 = vpop.f32.mrf.mxu0
        %v661 = vadd.f32 0.0, %v660
        %v662 = vpop.f32.mrf.mxu0
        %663 = vdwg.mxu0
        %v664 = vmul.f32 %v506, 1.5
        %v665 = vmul.f32 %v507, 1.5
        %v667 = vsel %vm244, %v581, 0
        %v670 = vsel %vm244, %v586, 0
        %672 = vmatprep.subr.mxu0 0.0
        %673 = vmatpush1.msra.mxu0 0.0
        %674 = vmatprep.subr.mxu0 0.0
        %675 = vmatpush1.msra.mxu0 0.0
        %676 = vmatprep.subr.mxu0 0.0
        %677 = vmatpush1.msra.mxu0 0.0
        %678 = vmatprep.subr.mxu0 0.0
        %679 = vmatpush1.msra.mxu0 0.0
        %680 = vmatprep.subr.mxu0 0.0
        %681 = vmatpush1.msra.mxu0 0.0
        %682 = vmatprep.subr.mxu0 0.0
        %683 = vmatpush1.msra.mxu0 0.0
        %684 = vmatprep.subr.mxu0 0.0
        %685 = vmatpush1.msra.mxu0 0.0
        %686 = vmatprep.subr.mxu0 0.0
        %687 = vmatpush1.msra.mxu0 0.0
        %688 = vmatprep.subr.mxu0 0.0
        %689 = vmatpush1.msra.mxu0 0.0
        %690 = vmatprep.subr.mxu0 0.0
        %691 = vmatpush1.msra.mxu0 0.0
        %692 = vmatprep.subr.mxu0 0.0
        %693 = vmatpush1.msra.mxu0 0.0
        %694 = vmatprep.subr.mxu0 0.0
        %695 = vmatpush1.msra.mxu0 0.0
        %696 = vmatprep.subr.mxu0 0.0
        %697 = vmatpush1.msra.mxu0 0.0
        %698 = vmatprep.subr.mxu0 0.0
        %699 = vmatpush1.msra.mxu0 0.0
        %700 = vmatprep.subr.mxu0 0.0
        %701 = vmatpush1.msra.mxu0 %v661
        %702 = vmatprep.subr.mxu0 0.0
        %703 = vmatpush1.msra.mxu0 %v656
        %704 = vmatprep.subr.mxu0 0.0
        %705 = vmatpush2.msra.mxu0 0.0
        %706 = vmatprep.subr.mxu0 0.0
        %707 = vmatpush2.msra.mxu0 0.0
        %708 = vmatprep.subr.mxu0 0.0
        %709 = vmatpush2.msra.mxu0 0.0
        %710 = vmatprep.subr.mxu0 0.0
        %711 = vmatpush2.msra.mxu0 0.0
        %712 = vmatprep.subr.mxu0 0.0
        %713 = vmatpush2.msra.mxu0 0.0
        %714 = vmatprep.subr.mxu0 0.0
        %715 = vmatpush2.msra.mxu0 0.0
        %716 = vmatprep.subr.mxu0 0.0
        %717 = vmatpush2.msra.mxu0 0.0
        %718 = vmatprep.subr.mxu0 0.0
        %719 = vmatpush2.msra.mxu0 0.0
        %720 = vmatprep.subr.mxu0 0.0
        %721 = vmatpush2.msra.mxu0 0.0
        %722 = vmatprep.subr.mxu0 0.0
        %723 = vmatpush2.msra.mxu0 0.0
        %724 = vmatprep.subr.mxu0 0.0
        %725 = vmatpush2.msra.mxu0 0.0
        %726 = vmatprep.subr.mxu0 0.0
        %727 = vmatpush2.msra.mxu0 0.0
        %728 = vmatprep.subr.mxu0 0.0
        %729 = vmatpush2.msra.mxu0 0.0
        %730 = vmatprep.subr.mxu0 0.0
        %731 = vmatpush2.msra.mxu0 0.0
        %732 = vmatprep.subr.mxu0 0.0
        %733 = vmatpush2.msra.mxu0 0.0
        %734 = vmatprep.subr.mxu0 0.0
        %735 = vmatpush2.msra.mxu0 0.0
        %736 = vmatprep.mubr.f32.mxu0 0.0
        %737 = vmatmul.mubr.f32.gmra.mxu0 %v667
        %v738 = vpop.f32.mrf.mxu0
        %v739 = vadd.f32 0.0, %v738
        %v740 = vpop.f32.mrf.mxu0
        %741 = vmatprep.mubr.f32.mxu0 0.0
        %742 = vmatmul.mubr.f32.gmra.mxu0 %v670
        %v743 = vpop.f32.mrf.mxu0
        %v744 = vadd.f32 0.0, %v743
        %v745 = vpop.f32.mrf.mxu0
        %746 = vdwg.mxu0
        %v747 = vmul.f32 %v739, 0.5
        %v748 = vmul.f32 %v744, 0.5
        %v749 = vsub.f32 %v664, %v747
        %v750 = vsub.f32 %v665, %v748
        %v752 = vsel %vm244, %v749, 0
        %v755 = vsel %vm244, %v750, 0
        %757 = vmatprep.subr.mxu0 0.0
        %758 = vmatpush1.msra.mxu0 0.0
        %759 = vmatprep.subr.mxu0 0.0
        %760 = vmatpush1.msra.mxu0 0.0
        %761 = vmatprep.subr.mxu0 0.0
        %762 = vmatpush1.msra.mxu0 0.0
        %763 = vmatprep.subr.mxu0 0.0
        %764 = vmatpush1.msra.mxu0 0.0
        %765 = vmatprep.subr.mxu0 0.0
        %766 = vmatpush1.msra.mxu0 0.0
        %767 = vmatprep.subr.mxu0 0.0
        %768 = vmatpush1.msra.mxu0 0.0
        %769 = vmatprep.subr.mxu0 0.0
        %770 = vmatpush1.msra.mxu0 0.0
        %771 = vmatprep.subr.mxu0 0.0
        %772 = vmatpush1.msra.mxu0 0.0
        %773 = vmatprep.subr.mxu0 0.0
        %774 = vmatpush1.msra.mxu0 0.0
        %775 = vmatprep.subr.mxu0 0.0
        %776 = vmatpush1.msra.mxu0 0.0
        %777 = vmatprep.subr.mxu0 0.0
        %778 = vmatpush1.msra.mxu0 0.0
        %779 = vmatprep.subr.mxu0 0.0
        %780 = vmatpush1.msra.mxu0 0.0
        %781 = vmatprep.subr.mxu0 0.0
        %782 = vmatpush1.msra.mxu0 0.0
        %783 = vmatprep.subr.mxu0 0.0
        %784 = vmatpush1.msra.mxu0 0.0
        %785 = vmatprep.subr.mxu0 0.0
        %786 = vmatpush1.msra.mxu0 %v750
        %787 = vmatprep.subr.mxu0 0.0
        %788 = vmatpush1.msra.mxu0 %v749
        %789 = vmatprep.subr.mxu0 0.0
        %790 = vmatpush2.msra.mxu0 0.0
        %791 = vmatprep.subr.mxu0 0.0
        %792 = vmatpush2.msra.mxu0 0.0
        %793 = vmatprep.subr.mxu0 0.0
        %794 = vmatpush2.msra.mxu0 0.0
        %795 = vmatprep.subr.mxu0 0.0
        %796 = vmatpush2.msra.mxu0 0.0
        %797 = vmatprep.subr.mxu0 0.0
        %798 = vmatpush2.msra.mxu0 0.0
        %799 = vmatprep.subr.mxu0 0.0
        %800 = vmatpush2.msra.mxu0 0.0
        %801 = vmatprep.subr.mxu0 0.0
        %802 = vmatpush2.msra.mxu0 0.0
        %803 = vmatprep.subr.mxu0 0.0
        %804 = vmatpush2.msra.mxu0 0.0
        %805 = vmatprep.subr.mxu0 0.0
        %806 = vmatpush2.msra.mxu0 0.0
        %807 = vmatprep.subr.mxu0 0.0
        %808 = vmatpush2.msra.mxu0 0.0
        %809 = vmatprep.subr.mxu0 0.0
        %810 = vmatpush2.msra.mxu0 0.0
        %811 = vmatprep.subr.mxu0 0.0
        %812 = vmatpush2.msra.mxu0 0.0
        %813 = vmatprep.subr.mxu0 0.0
        %814 = vmatpush2.msra.mxu0 0.0
        %815 = vmatprep.subr.mxu0 0.0
        %816 = vmatpush2.msra.mxu0 0.0
        %817 = vmatprep.subr.mxu0 0.0
        %818 = vmatpush2.msra.mxu0 0.0
        %819 = vmatprep.subr.mxu0 0.0
        %820 = vmatpush2.msra.mxu0 0.0
        %821 = vmatprep.mubr.f32.mxu0 0.0
        %822 = vmatmul.mubr.f32.gmra.mxu0 %v752
        %v823 = vpop.f32.mrf.mxu0
        %v824 = vadd.f32 0.0, %v823
        %v825 = vpop.f32.mrf.mxu0
        %826 = vmatprep.mubr.f32.mxu0 0.0
        %827 = vmatmul.mubr.f32.gmra.mxu0 %v755
        %v828 = vpop.f32.mrf.mxu0
        %v829 = vadd.f32 0.0, %v828
        %v830 = vpop.f32.mrf.mxu0
        %831 = vdwg.mxu0
        %832 = vmatprep.subr.mxu0 0.0
        %833 = vmatpush1.msra.mxu0 0.0
        %834 = vmatprep.subr.mxu0 0.0
        %835 = vmatpush1.msra.mxu0 0.0
        %836 = vmatprep.subr.mxu0 0.0
        %837 = vmatpush1.msra.mxu0 0.0
        %838 = vmatprep.subr.mxu0 0.0
        %839 = vmatpush1.msra.mxu0 0.0
        %840 = vmatprep.subr.mxu0 0.0
        %841 = vmatpush1.msra.mxu0 0.0
        %842 = vmatprep.subr.mxu0 0.0
        %843 = vmatpush1.msra.mxu0 0.0
        %844 = vmatprep.subr.mxu0 0.0
        %845 = vmatpush1.msra.mxu0 0.0
        %846 = vmatprep.subr.mxu0 0.0
        %847 = vmatpush1.msra.mxu0 0.0
        %848 = vmatprep.subr.mxu0 0.0
        %849 = vmatpush1.msra.mxu0 0.0
        %850 = vmatprep.subr.mxu0 0.0
        %851 = vmatpush1.msra.mxu0 0.0
        %852 = vmatprep.subr.mxu0 0.0
        %853 = vmatpush1.msra.mxu0 0.0
        %854 = vmatprep.subr.mxu0 0.0
        %855 = vmatpush1.msra.mxu0 0.0
        %856 = vmatprep.subr.mxu0 0.0
        %857 = vmatpush1.msra.mxu0 0.0
        %858 = vmatprep.subr.mxu0 0.0
        %859 = vmatpush1.msra.mxu0 0.0
        %860 = vmatprep.subr.mxu0 0.0
        %861 = vmatpush1.msra.mxu0 %v258
        %862 = vmatprep.subr.mxu0 0.0
        %863 = vmatpush1.msra.mxu0 %v257
        %864 = vmatprep.subr.mxu0 0.0
        %865 = vmatpush2.msra.mxu0 0.0
        %866 = vmatprep.subr.mxu0 0.0
        %867 = vmatpush2.msra.mxu0 0.0
        %868 = vmatprep.subr.mxu0 0.0
        %869 = vmatpush2.msra.mxu0 0.0
        %870 = vmatprep.subr.mxu0 0.0
        %871 = vmatpush2.msra.mxu0 0.0
        %872 = vmatprep.subr.mxu0 0.0
        %873 = vmatpush2.msra.mxu0 0.0
        %874 = vmatprep.subr.mxu0 0.0
        %875 = vmatpush2.msra.mxu0 0.0
        %876 = vmatprep.subr.mxu0 0.0
        %877 = vmatpush2.msra.mxu0 0.0
        %878 = vmatprep.subr.mxu0 0.0
        %879 = vmatpush2.msra.mxu0 0.0
        %880 = vmatprep.subr.mxu0 0.0
        %881 = vmatpush2.msra.mxu0 0.0
        %882 = vmatprep.subr.mxu0 0.0
        %883 = vmatpush2.msra.mxu0 0.0
        %884 = vmatprep.subr.mxu0 0.0
        %885 = vmatpush2.msra.mxu0 0.0
        %886 = vmatprep.subr.mxu0 0.0
        %887 = vmatpush2.msra.mxu0 0.0
        %888 = vmatprep.subr.mxu0 0.0
        %889 = vmatpush2.msra.mxu0 0.0
        %890 = vmatprep.subr.mxu0 0.0
        %891 = vmatpush2.msra.mxu0 0.0
        %892 = vmatprep.subr.mxu0 0.0
        %893 = vmatpush2.msra.mxu0 0.0
        %894 = vmatprep.subr.mxu0 0.0
        %895 = vmatpush2.msra.mxu0 0.0
        %896 = vmatprep.mubr.f32.mxu0 0.0
        %897 = vmatmul.mubr.f32.gmra.mxu0 %v752
        %v898 = vpop.f32.mrf.mxu0
        %v899 = vadd.f32 0.0, %v898
        %v900 = vpop.f32.mrf.mxu0
        %901 = vmatprep.mubr.f32.mxu0 0.0
        %902 = vmatmul.mubr.f32.gmra.mxu0 %v755
        %v903 = vpop.f32.mrf.mxu0
        %v904 = vadd.f32 0.0, %v903
        %v905 = vpop.f32.mrf.mxu0
        %906 = vdwg.mxu0
        %v907 = vmul.f32 %v749, 1.5
        %v908 = vmul.f32 %v750, 1.5
        %v910 = vsel %vm244, %v824, 0
        %v913 = vsel %vm244, %v829, 0
        %915 = vmatprep.subr.mxu0 0.0
        %916 = vmatpush1.msra.mxu0 0.0
        %917 = vmatprep.subr.mxu0 0.0
        %918 = vmatpush1.msra.mxu0 0.0
        %919 = vmatprep.subr.mxu0 0.0
        %920 = vmatpush1.msra.mxu0 0.0
        %921 = vmatprep.subr.mxu0 0.0
        %922 = vmatpush1.msra.mxu0 0.0
        %923 = vmatprep.subr.mxu0 0.0
        %924 = vmatpush1.msra.mxu0 0.0
        %925 = vmatprep.subr.mxu0 0.0
        %926 = vmatpush1.msra.mxu0 0.0
        %927 = vmatprep.subr.mxu0 0.0
        %928 = vmatpush1.msra.mxu0 0.0
        %929 = vmatprep.subr.mxu0 0.0
        %930 = vmatpush1.msra.mxu0 0.0
        %931 = vmatprep.subr.mxu0 0.0
        %932 = vmatpush1.msra.mxu0 0.0
        %933 = vmatprep.subr.mxu0 0.0
        %934 = vmatpush1.msra.mxu0 0.0
        %935 = vmatprep.subr.mxu0 0.0
        %936 = vmatpush1.msra.mxu0 0.0
        %937 = vmatprep.subr.mxu0 0.0
        %938 = vmatpush1.msra.mxu0 0.0
        %939 = vmatprep.subr.mxu0 0.0
        %940 = vmatpush1.msra.mxu0 0.0
        %941 = vmatprep.subr.mxu0 0.0
        %942 = vmatpush1.msra.mxu0 0.0
        %943 = vmatprep.subr.mxu0 0.0
        %944 = vmatpush1.msra.mxu0 %v904
        %945 = vmatprep.subr.mxu0 0.0
        %946 = vmatpush1.msra.mxu0 %v899
        %947 = vmatprep.subr.mxu0 0.0
        %948 = vmatpush2.msra.mxu0 0.0
        %949 = vmatprep.subr.mxu0 0.0
        %950 = vmatpush2.msra.mxu0 0.0
        %951 = vmatprep.subr.mxu0 0.0
        %952 = vmatpush2.msra.mxu0 0.0
        %953 = vmatprep.subr.mxu0 0.0
        %954 = vmatpush2.msra.mxu0 0.0
        %955 = vmatprep.subr.mxu0 0.0
        %956 = vmatpush2.msra.mxu0 0.0
        %957 = vmatprep.subr.mxu0 0.0
        %958 = vmatpush2.msra.mxu0 0.0
        %959 = vmatprep.subr.mxu0 0.0
        %960 = vmatpush2.msra.mxu0 0.0
        %961 = vmatprep.subr.mxu0 0.0
        %962 = vmatpush2.msra.mxu0 0.0
        %963 = vmatprep.subr.mxu0 0.0
        %964 = vmatpush2.msra.mxu0 0.0
        %965 = vmatprep.subr.mxu0 0.0
        %966 = vmatpush2.msra.mxu0 0.0
        %967 = vmatprep.subr.mxu0 0.0
        %968 = vmatpush2.msra.mxu0 0.0
        %969 = vmatprep.subr.mxu0 0.0
        %970 = vmatpush2.msra.mxu0 0.0
        %971 = vmatprep.subr.mxu0 0.0
        %972 = vmatpush2.msra.mxu0 0.0
        %973 = vmatprep.subr.mxu0 0.0
        %974 = vmatpush2.msra.mxu0 0.0
        %975 = vmatprep.subr.mxu0 0.0
        %976 = vmatpush2.msra.mxu0 0.0
        %977 = vmatprep.subr.mxu0 0.0
        %978 = vmatpush2.msra.mxu0 0.0
        %979 = vmatprep.mubr.f32.mxu0 0.0
        %980 = vmatmul.mubr.f32.gmra.mxu0 %v910
        %v981 = vpop.f32.mrf.mxu0
        %v982 = vadd.f32 0.0, %v981
        %v983 = vpop.f32.mrf.mxu0
        %984 = vmatprep.mubr.f32.mxu0 0.0
        %985 = vmatmul.mubr.f32.gmra.mxu0 %v913
        %v986 = vpop.f32.mrf.mxu0
        %v987 = vadd.f32 0.0, %v986
        %v988 = vpop.f32.mrf.mxu0
        %989 = vdwg.mxu0
        %v990 = vmul.f32 %v982, 0.5
        %v991 = vmul.f32 %v987, 0.5
        %v992 = vsub.f32 %v907, %v990
        %v993 = vsub.f32 %v908, %v991
        %v995 = vsel %vm244, %v992, 0
        %v998 = vsel %vm244, %v993, 0
        %1000 = vmatprep.subr.mxu0 0.0
        %1001 = vmatpush1.msra.mxu0 0.0
        %1002 = vmatprep.subr.mxu0 0.0
        %1003 = vmatpush1.msra.mxu0 0.0
        %1004 = vmatprep.subr.mxu0 0.0
        %1005 = vmatpush1.msra.mxu0 0.0
        %1006 = vmatprep.subr.mxu0 0.0
        %1007 = vmatpush1.msra.mxu0 0.0
        %1008 = vmatprep.subr.mxu0 0.0
        %1009 = vmatpush1.msra.mxu0 0.0
        %1010 = vmatprep.subr.mxu0 0.0
        %1011 = vmatpush1.msra.mxu0 0.0
        %1012 = vmatprep.subr.mxu0 0.0
        %1013 = vmatpush1.msra.mxu0 0.0
        %1014 = vmatprep.subr.mxu0 0.0
        %1015 = vmatpush1.msra.mxu0 0.0
        %1016 = vmatprep.subr.mxu0 0.0
        %1017 = vmatpush1.msra.mxu0 0.0
        %1018 = vmatprep.subr.mxu0 0.0
        %1019 = vmatpush1.msra.mxu0 0.0
        %1020 = vmatprep.subr.mxu0 0.0
        %1021 = vmatpush1.msra.mxu0 0.0
        %1022 = vmatprep.subr.mxu0 0.0
        %1023 = vmatpush1.msra.mxu0 0.0
        %1024 = vmatprep.subr.mxu0 0.0
        %1025 = vmatpush1.msra.mxu0 0.0
        %1026 = vmatprep.subr.mxu0 0.0
        %1027 = vmatpush1.msra.mxu0 0.0
        %1028 = vmatprep.subr.mxu0 0.0
        %1029 = vmatpush1.msra.mxu0 %v993
        %1030 = vmatprep.subr.mxu0 0.0
        %1031 = vmatpush1.msra.mxu0 %v992
        %1032 = vmatprep.subr.mxu0 0.0
        %1033 = vmatpush2.msra.mxu0 0.0
        %1034 = vmatprep.subr.mxu0 0.0
        %1035 = vmatpush2.msra.mxu0 0.0
        %1036 = vmatprep.subr.mxu0 0.0
        %1037 = vmatpush2.msra.mxu0 0.0
        %1038 = vmatprep.subr.mxu0 0.0
        %1039 = vmatpush2.msra.mxu0 0.0
        %1040 = vmatprep.subr.mxu0 0.0
        %1041 = vmatpush2.msra.mxu0 0.0
        %1042 = vmatprep.subr.mxu0 0.0
        %1043 = vmatpush2.msra.mxu0 0.0
        %1044 = vmatprep.subr.mxu0 0.0
        %1045 = vmatpush2.msra.mxu0 0.0
        %1046 = vmatprep.subr.mxu0 0.0
        %1047 = vmatpush2.msra.mxu0 0.0
        %1048 = vmatprep.subr.mxu0 0.0
        %1049 = vmatpush2.msra.mxu0 0.0
        %1050 = vmatprep.subr.mxu0 0.0
        %1051 = vmatpush2.msra.mxu0 0.0
        %1052 = vmatprep.subr.mxu0 0.0
        %1053 = vmatpush2.msra.mxu0 0.0
        %1054 = vmatprep.subr.mxu0 0.0
        %1055 = vmatpush2.msra.mxu0 0.0
        %1056 = vmatprep.subr.mxu0 0.0
        %1057 = vmatpush2.msra.mxu0 0.0
        %1058 = vmatprep.subr.mxu0 0.0
        %1059 = vmatpush2.msra.mxu0 0.0
        %1060 = vmatprep.subr.mxu0 0.0
        %1061 = vmatpush2.msra.mxu0 0.0
        %1062 = vmatprep.subr.mxu0 0.0
        %1063 = vmatpush2.msra.mxu0 0.0
        %1064 = vmatprep.mubr.f32.mxu0 0.0
        %1065 = vmatmul.mubr.f32.gmra.mxu0 %v995
        %v1066 = vpop.f32.mrf.mxu0
        %v1067 = vadd.f32 0.0, %v1066
        %v1068 = vpop.f32.mrf.mxu0
        %1069 = vmatprep.mubr.f32.mxu0 0.0
        %1070 = vmatmul.mubr.f32.gmra.mxu0 %v998
        %v1071 = vpop.f32.mrf.mxu0
        %v1072 = vadd.f32 0.0, %v1071
        %v1073 = vpop.f32.mrf.mxu0
        %1074 = vdwg.mxu0
        %1075 = vmatprep.subr.mxu0 0.0
        %1076 = vmatpush1.msra.mxu0 0.0
        %1077 = vmatprep.subr.mxu0 0.0
        %1078 = vmatpush1.msra.mxu0 0.0
        %1079 = vmatprep.subr.mxu0 0.0
        %1080 = vmatpush1.msra.mxu0 0.0
        %1081 = vmatprep.subr.mxu0 0.0
        %1082 = vmatpush1.msra.mxu0 0.0
        %1083 = vmatprep.subr.mxu0 0.0
        %1084 = vmatpush1.msra.mxu0 0.0
        %1085 = vmatprep.subr.mxu0 0.0
        %1086 = vmatpush1.msra.mxu0 0.0
        %1087 = vmatprep.subr.mxu0 0.0
        %1088 = vmatpush1.msra.mxu0 0.0
        %1089 = vmatprep.subr.mxu0 0.0
        %1090 = vmatpush1.msra.mxu0 0.0
        %1091 = vmatprep.subr.mxu0 0.0
        %1092 = vmatpush1.msra.mxu0 0.0
        %1093 = vmatprep.subr.mxu0 0.0
        %1094 = vmatpush1.msra.mxu0 0.0
        %1095 = vmatprep.subr.mxu0 0.0
        %1096 = vmatpush1.msra.mxu0 0.0
        %1097 = vmatprep.subr.mxu0 0.0
        %1098 = vmatpush1.msra.mxu0 0.0
        %1099 = vmatprep.subr.mxu0 0.0
        %1100 = vmatpush1.msra.mxu0 0.0
        %1101 = vmatprep.subr.mxu0 0.0
        %1102 = vmatpush1.msra.mxu0 0.0
        %1103 = vmatprep.subr.mxu0 0.0
        %1104 = vmatpush1.msra.mxu0 %v258
        %1105 = vmatprep.subr.mxu0 0.0
        %1106 = vmatpush1.msra.mxu0 %v257
        %1107 = vmatprep.subr.mxu0 0.0
        %1108 = vmatpush2.msra.mxu0 0.0
        %1109 = vmatprep.subr.mxu0 0.0
        %1110 = vmatpush2.msra.mxu0 0.0
        %1111 = vmatprep.subr.mxu0 0.0
        %1112 = vmatpush2.msra.mxu0 0.0
        %1113 = vmatprep.subr.mxu0 0.0
        %1114 = vmatpush2.msra.mxu0 0.0
        %1115 = vmatprep.subr.mxu0 0.0
        %1116 = vmatpush2.msra.mxu0 0.0
        %1117 = vmatprep.subr.mxu0 0.0
        %1118 = vmatpush2.msra.mxu0 0.0
        %1119 = vmatprep.subr.mxu0 0.0
        %1120 = vmatpush2.msra.mxu0 0.0
        %1121 = vmatprep.subr.mxu0 0.0
        %1122 = vmatpush2.msra.mxu0 0.0
        %1123 = vmatprep.subr.mxu0 0.0
        %1124 = vmatpush2.msra.mxu0 0.0
        %1125 = vmatprep.subr.mxu0 0.0
        %1126 = vmatpush2.msra.mxu0 0.0
        %1127 = vmatprep.subr.mxu0 0.0
        %1128 = vmatpush2.msra.mxu0 0.0
        %1129 = vmatprep.subr.mxu0 0.0
        %1130 = vmatpush2.msra.mxu0 0.0
        %1131 = vmatprep.subr.mxu0 0.0
        %1132 = vmatpush2.msra.mxu0 0.0
        %1133 = vmatprep.subr.mxu0 0.0
        %1134 = vmatpush2.msra.mxu0 0.0
        %1135 = vmatprep.subr.mxu0 0.0
        %1136 = vmatpush2.msra.mxu0 0.0
        %1137 = vmatprep.subr.mxu0 0.0
        %1138 = vmatpush2.msra.mxu0 0.0
        %1139 = vmatprep.mubr.f32.mxu0 0.0
        %1140 = vmatmul.mubr.f32.gmra.mxu0 %v995
        %v1141 = vpop.f32.mrf.mxu0
        %v1142 = vadd.f32 0.0, %v1141
        %v1143 = vpop.f32.mrf.mxu0
        %1144 = vmatprep.mubr.f32.mxu0 0.0
        %1145 = vmatmul.mubr.f32.gmra.mxu0 %v998
        %v1146 = vpop.f32.mrf.mxu0
        %v1147 = vadd.f32 0.0, %v1146
        %v1148 = vpop.f32.mrf.mxu0
        %1149 = vdwg.mxu0
        %v1150 = vmul.f32 %v992, 1.5
        %v1151 = vmul.f32 %v993, 1.5
        %v1153 = vsel %vm244, %v1067, 0
        %v1156 = vsel %vm244, %v1072, 0
        %1158 = vmatprep.subr.mxu0 0.0
        %1159 = vmatpush1.msra.mxu0 0.0
        %1160 = vmatprep.subr.mxu0 0.0
        %1161 = vmatpush1.msra.mxu0 0.0
        %1162 = vmatprep.subr.mxu0 0.0
        %1163 = vmatpush1.msra.mxu0 0.0
        %1164 = vmatprep.subr.mxu0 0.0
        %1165 = vmatpush1.msra.mxu0 0.0
        %1166 = vmatprep.subr.mxu0 0.0
        %1167 = vmatpush1.msra.mxu0 0.0
        %1168 = vmatprep.subr.mxu0 0.0
        %1169 = vmatpush1.msra.mxu0 0.0
        %1170 = vmatprep.subr.mxu0 0.0
        %1171 = vmatpush1.msra.mxu0 0.0
        %1172 = vmatprep.subr.mxu0 0.0
        %1173 = vmatpush1.msra.mxu0 0.0
        %1174 = vmatprep.subr.mxu0 0.0
        %1175 = vmatpush1.msra.mxu0 0.0
        %1176 = vmatprep.subr.mxu0 0.0
        %1177 = vmatpush1.msra.mxu0 0.0
        %1178 = vmatprep.subr.mxu0 0.0
        %1179 = vmatpush1.msra.mxu0 0.0
        %1180 = vmatprep.subr.mxu0 0.0
        %1181 = vmatpush1.msra.mxu0 0.0
        %1182 = vmatprep.subr.mxu0 0.0
        %1183 = vmatpush1.msra.mxu0 0.0
        %1184 = vmatprep.subr.mxu0 0.0
        %1185 = vmatpush1.msra.mxu0 0.0
        %1186 = vmatprep.subr.mxu0 0.0
        %1187 = vmatpush1.msra.mxu0 %v1147
        %1188 = vmatprep.subr.mxu0 0.0
        %1189 = vmatpush1.msra.mxu0 %v1142
        %1190 = vmatprep.subr.mxu0 0.0
        %1191 = vmatpush2.msra.mxu0 0.0
        %1192 = vmatprep.subr.mxu0 0.0
        %1193 = vmatpush2.msra.mxu0 0.0
        %1194 = vmatprep.subr.mxu0 0.0
        %1195 = vmatpush2.msra.mxu0 0.0
        %1196 = vmatprep.subr.mxu0 0.0
        %1197 = vmatpush2.msra.mxu0 0.0
        %1198 = vmatprep.subr.mxu0 0.0
        %1199 = vmatpush2.msra.mxu0 0.0
        %1200 = vmatprep.subr.mxu0 0.0
        %1201 = vmatpush2.msra.mxu0 0.0
        %1202 = vmatprep.subr.mxu0 0.0
        %1203 = vmatpush2.msra.mxu0 0.0
        %1204 = vmatprep.subr.mxu0 0.0
        %1205 = vmatpush2.msra.mxu0 0.0
        %1206 = vmatprep.subr.mxu0 0.0
        %1207 = vmatpush2.msra.mxu0 0.0
        %1208 = vmatprep.subr.mxu0 0.0
        %1209 = vmatpush2.msra.mxu0 0.0
        %1210 = vmatprep.subr.mxu0 0.0
        %1211 = vmatpush2.msra.mxu0 0.0
        %1212 = vmatprep.subr.mxu0 0.0
        %1213 = vmatpush2.msra.mxu0 0.0
        %1214 = vmatprep.subr.mxu0 0.0
        %1215 = vmatpush2.msra.mxu0 0.0
        %1216 = vmatprep.subr.mxu0 0.0
        %1217 = vmatpush2.msra.mxu0 0.0
        %1218 = vmatprep.subr.mxu0 0.0
        %1219 = vmatpush2.msra.mxu0 0.0
        %1220 = vmatprep.subr.mxu0 0.0
        %1221 = vmatpush2.msra.mxu0 0.0
        %1222 = vmatprep.mubr.f32.mxu0 0.0
        %1223 = vmatmul.mubr.f32.gmra.mxu0 %v1153
        %v1224 = vpop.f32.mrf.mxu0
        %v1225 = vadd.f32 0.0, %v1224
        %v1226 = vpop.f32.mrf.mxu0
        %1227 = vmatprep.mubr.f32.mxu0 0.0
        %1228 = vmatmul.mubr.f32.gmra.mxu0 %v1156
        %v1229 = vpop.f32.mrf.mxu0
        %v1230 = vadd.f32 0.0, %v1229
        %v1231 = vpop.f32.mrf.mxu0
        %1232 = vdwg.mxu0
        %v1233 = vmul.f32 %v1225, 0.5
        %v1234 = vmul.f32 %v1230, 0.5
        %v1235 = vsub.f32 %v1150, %v1233
        %v1236 = vsub.f32 %v1151, %v1234
        %v1237 = vrsqrt.pop %v256
        %v1238 = vmul.f32 %v256, %v1237
        %vm1239 = vcmp.eq.f32.partialorder %v256, inf
        %v1240 = vsel %vm1239, %v256, %v1238
        %vm1241 = vcmp.eq.f32.partialorder %v256, 0.0
        %v1242 = vand.u32 %v256, 2147483648
        %v1243 = vsel %vm1241, %v1242, %v1240
        %v1244 = vmul.f32 %v1235, %v1243
        %v1245 = vmul.f32 %v1236, %v1243
        %v1247 = vsel %vm244, %v1244, 0
        %v1250 = vsel %vm244, %v1245, 0
        %1252 = vmatprep.subr.mxu0 0.0
        %1253 = vmatpush1.msra.mxu0 0.0
        %1254 = vmatprep.subr.mxu0 0.0
        %1255 = vmatpush1.msra.mxu0 0.0
        %1256 = vmatprep.subr.mxu0 0.0
        %1257 = vmatpush1.msra.mxu0 0.0
        %1258 = vmatprep.subr.mxu0 0.0
        %1259 = vmatpush1.msra.mxu0 0.0
        %1260 = vmatprep.subr.mxu0 0.0
        %1261 = vmatpush1.msra.mxu0 0.0
        %1262 = vmatprep.subr.mxu0 0.0
        %1263 = vmatpush1.msra.mxu0 0.0
        %1264 = vmatprep.subr.mxu0 0.0
        %1265 = vmatpush1.msra.mxu0 0.0
        %1266 = vmatprep.subr.mxu0 0.0
        %1267 = vmatpush1.msra.mxu0 0.0
        %1268 = vmatprep.subr.mxu0 0.0
        %1269 = vmatpush1.msra.mxu0 0.0
        %1270 = vmatprep.subr.mxu0 0.0
        %1271 = vmatpush1.msra.mxu0 0.0
        %1272 = vmatprep.subr.mxu0 0.0
        %1273 = vmatpush1.msra.mxu0 0.0
        %1274 = vmatprep.subr.mxu0 0.0
        %1275 = vmatpush1.msra.mxu0 0.0
        %1276 = vmatprep.subr.mxu0 0.0
        %1277 = vmatpush1.msra.mxu0 0.0
        %1278 = vmatprep.subr.mxu0 0.0
        %1279 = vmatpush1.msra.mxu0 0.0
        %1280 = vmatprep.subr.mxu0 0.0
        %1281 = vmatpush1.msra.mxu0 %v147
        %1282 = vmatprep.subr.mxu0 0.0
        %1283 = vmatpush1.msra.mxu0 %v146
        %1284 = vmatprep.subr.mxu0 0.0
        %1285 = vmatpush2.msra.mxu0 0.0
        %1286 = vmatprep.subr.mxu0 0.0
        %1287 = vmatpush2.msra.mxu0 0.0
        %1288 = vmatprep.subr.mxu0 0.0
        %1289 = vmatpush2.msra.mxu0 0.0
        %1290 = vmatprep.subr.mxu0 0.0
        %1291 = vmatpush2.msra.mxu0 0.0
        %1292 = vmatprep.subr.mxu0 0.0
        %1293 = vmatpush2.msra.mxu0 0.0
        %1294 = vmatprep.subr.mxu0 0.0
        %1295 = vmatpush2.msra.mxu0 0.0
        %1296 = vmatprep.subr.mxu0 0.0
        %1297 = vmatpush2.msra.mxu0 0.0
        %1298 = vmatprep.subr.mxu0 0.0
        %1299 = vmatpush2.msra.mxu0 0.0
        %1300 = vmatprep.subr.mxu0 0.0
        %1301 = vmatpush2.msra.mxu0 0.0
        %1302 = vmatprep.subr.mxu0 0.0
        %1303 = vmatpush2.msra.mxu0 0.0
        %1304 = vmatprep.subr.mxu0 0.0
        %1305 = vmatpush2.msra.mxu0 0.0
        %1306 = vmatprep.subr.mxu0 0.0
        %1307 = vmatpush2.msra.mxu0 0.0
        %1308 = vmatprep.subr.mxu0 0.0
        %1309 = vmatpush2.msra.mxu0 0.0
        %1310 = vmatprep.subr.mxu0 0.0
        %1311 = vmatpush2.msra.mxu0 0.0
        %1312 = vmatprep.subr.mxu0 0.0
        %1313 = vmatpush2.msra.mxu0 0.0
        %1314 = vmatprep.subr.mxu0 0.0
        %1315 = vmatpush2.msra.mxu0 0.0
        %1316 = vmatprep.mubr.f32.mxu0 0.0
        %1317 = vmatmul.mubr.f32.gmra.mxu0 %v1247
        %v1318 = vpop.f32.mrf.mxu0
        %v1319 = vadd.f32 0.0, %v1318
        %v1320 = vpop.f32.mrf.mxu0
        %1321 = vmatprep.mubr.f32.mxu0 0.0
        %1322 = vmatmul.mubr.f32.gmra.mxu0 %v1250
        %v1323 = vpop.f32.mrf.mxu0
        %v1324 = vadd.f32 0.0, %v1323
        %v1325 = vpop.f32.mrf.mxu0
        %1326 = vdwg.mxu0
        %1327 = vst.msk [vmem:[%s134] sm:$0xff] %vm137, %v1319
        %1328 = vst.msk [vmem:[%s134 + $0x8] sm:$0xff] %vm137, %v1324
        %s1329 = sand.u32 %s52, 1
        %s1330 = scalar_lea.sflag [#allocation4], %s1329
        %s1331 = sand.u32 %s52, 1
        %s1332 = smul.addr %s1331, 16
        %s1333 = scalar_lea.vmem [#allocation5], %s1332
        // Predicated region
        $region29: #{tpu_custom_call.1} parent=23 // pred_check
          %p1334 = pneg %p62
        $region30: #{tpu_custom_call.1} parent=23 // pred_check_branch
          %1336 = sbr.rel (%p1334) target = $region32
        $region31: #{tpu_custom_call.1} parent=23 // pred_region
          %s1338 = ssub.s32 256, 256
          %1339 = vsyncadd %s1330, %s1338
          %s1340 = smul.addr %s18, 2
          %s1341 = smul.addr %s1340, 128
          %s1342 = scalar_lea.hbm %s1, %s1341
          %s1343 = sshll.u32 %s1333, 4
          %s1344 = int_to_ptr.vmem [resolvable:$true] %s1343
          %1349 = dma.vmem_to_hbm [thread:$0]  %s1344, 256, %s1342, %s1330, 128, 128, 8
        $region32: #{tpu_custom_call.1} parent=23 // pred_fallthru
          _
      $region24: #{tpu_custom_call.1} parent=5 // pred_fallthru
        _
      %p1350 = scmp.le.s32.totalorder 2, %s13
      // Predicated region
      $region33: #{tpu_custom_call.1} parent=5 // pred_check
        %p1351 = pneg %p1350
      $region34: #{tpu_custom_call.1} parent=5 // pred_check_branch
        %1353 = sbr.rel (%p1351) target = $region36
      $region35: #{tpu_custom_call.1} parent=5 // pred_region
        %s1354 = ssub.s32 %s13, 2
        // Predicated region
        $region37: #{tpu_custom_call.1} parent=35 // pred_check
          %p1355 = pneg %p68
        $region38: #{tpu_custom_call.1} parent=35 // pred_check_branch
          %1357 = sbr.rel (%p1355) target = $region40
        $region39: #{tpu_custom_call.1} parent=35 // pred_region
          %s1358 = sand.u32 %s53, 1
          %s1359 = scalar_lea.sflag [#allocation4], %s1358
          %s1360 = sand.u32 %s53, 1
          %s1361 = smul.addr %s1360, 16
          %s1362 = scalar_lea.vmem [#allocation5], %s1361
          %1363 = dma.done %s1359, 256
        $region40: #{tpu_custom_call.1} parent=35 // pred_fallthru
          _
      $region36: #{tpu_custom_call.1} parent=5 // pred_fallthru
        _
    $region6: #{tpu_custom_call.1} parent=1 // loop_footer
      %s17 = sadd.s32 1, %s13
    $region7: #{tpu_custom_call.1} parent=1 // loop_footer_branch
      %12 = sbr.rel target = $region3
    $region8: #{tpu_custom_call.1} parent=1 // loop_exit
      _
    %1364 = vsyncpa [#allocation3], 1
    %s1365 = scalar_lea.sflag [#allocation3], 1
    %1366 = vsyncpa %s1365, 1
    %1367 = vsyncpa [#allocation4], 1
    %s1368 = scalar_lea.sflag [#allocation4], 1
    %1369 = vsyncpa %s1368, 1

</llo_original>
